<compile_context>
chip_gen: v7x
topology: tpu7x:2x2x1
jax: 0.10.0
libtpu: 0.0.40
codegen_flags: <defaults>
</compile_context>

<pallas_src>
import functools
import math

import jax
import jax.numpy as jnp
from jax.experimental import pallas as pl
from jax.experimental.pallas import tpu as pltpu


# ----------------------------------------------------------------------------
# tiling helper
# ----------------------------------------------------------------------------
def _choose_tile(dim, max_tile, align):
    """Largest multiple of `align` <= max_tile that divides `dim`; else full dim.

    Keeps block shapes compatible with the TPU (8, 128) tiling rule: either the
    tile divides evenly with the required alignment or we fall back to the full
    dimension (which is always legal).
    """
    if dim <= max_tile or dim % align != 0:
        return dim
    t = (max_tile // align) * align
    while t >= align:
        if dim % t == 0:
            return t
        t -= align
    return dim


# ----------------------------------------------------------------------------
# Tiled linear: y = x @ W + b  (W stored (K, N) bf16), optional fused ReLU
# ----------------------------------------------------------------------------
def _linear_kernel(x_ref, w_ref, b_ref, o_ref, acc_ref, *, relu):
    k = pl.program_id(2)

    @pl.when(k == 0)
    def _():
        acc_ref[...] = jnp.zeros_like(acc_ref)

    acc_ref[...] += jnp.dot(
        x_ref[...].astype(jnp.bfloat16), w_ref[...],
        preferred_element_type=jnp.float32)

    @pl.when(k == pl.num_programs(2) - 1)
    def _():
        y = acc_ref[...] + b_ref[...]
        if relu:
            y = jnp.maximum(y, 0.0)
        o_ref[...] = y.astype(o_ref.dtype)


def linear_pallas(x, w_kn, b, *, relu=False):
    M, K = x.shape
    K2, N = w_kn.shape
    assert K == K2
    tm = _choose_tile(M, 256, 8)
    tn = _choose_tile(N, 256, 128)
    tk = _choose_tile(K, 512, 128)
    kernel = functools.partial(_linear_kernel, relu=relu)
    return pl.pallas_call(
        kernel,
        out_shape=jax.ShapeDtypeStruct((M, N), jnp.float32),
        grid_spec=pltpu.PrefetchScalarGridSpec(
            num_scalar_prefetch=0,
            grid=(M // tm, N // tn, K // tk),
            in_specs=[
                pl.BlockSpec((tm, tk), lambda i, j, k: (i, k)),
                pl.BlockSpec((tk, tn), lambda i, j, k: (k, j)),
                pl.BlockSpec((1, tn), lambda i, j, k: (0, j)),
            ],
            out_specs=pl.BlockSpec((tm, tn), lambda i, j, k: (i, j)),
            scratch_shapes=[pltpu.VMEM((tm, tn), jnp.float32)],
        ),
        compiler_params=pltpu.CompilerParams(
            dimension_semantics=("parallel", "parallel", "arbitrary")),
    )(x, w_kn, b.reshape(1, N))


# ----------------------------------------------------------------------------
# Tiled linear with fused residual-add + LayerNorm epilogue (post-norm block).
# N (= embed dim) is kept un-tiled so the row-wise norm sees the full row.
# ----------------------------------------------------------------------------
def _linear_res_ln_kernel(x_ref, w_ref, b_ref, r_ref, g_ref, bt_ref,
                          o_ref, acc_ref, *, eps):
    k = pl.program_id(1)

    @pl.when(k == 0)
    def _():
        acc_ref[...] = jnp.zeros_like(acc_ref)

    acc_ref[...] += jnp.dot(
        x_ref[...].astype(jnp.bfloat16), w_ref[...],
        preferred_element_type=jnp.float32)

    @pl.when(k == pl.num_programs(1) - 1)
    def _():
        h = acc_ref[...] + b_ref[...] + r_ref[...]
        mu = jnp.mean(h, axis=-1, keepdims=True)
        var = jnp.mean((h - mu) * (h - mu), axis=-1, keepdims=True)
        o_ref[...] = ((h - mu) * jax.lax.rsqrt(var + eps)
                      * g_ref[...] + bt_ref[...]).astype(o_ref.dtype)


def linear_residual_layernorm_pallas(x, w_kn, b, resid, gamma, beta, eps=1e-5):
    M, K = x.shape
    _, N = w_kn.shape
    tm = _choose_tile(M, 256, 8)
    tk = _choose_tile(K, 512, 128)
    kernel = functools.partial(_linear_res_ln_kernel, eps=eps)
    return pl.pallas_call(
        kernel,
        out_shape=jax.ShapeDtypeStruct((M, N), jnp.float32),
        grid_spec=pltpu.PrefetchScalarGridSpec(
            num_scalar_prefetch=0,
            grid=(M // tm, K // tk),
            in_specs=[
                pl.BlockSpec((tm, tk), lambda i, k: (i, k)),
                pl.BlockSpec((tk, N), lambda i, k: (k, 0)),
                pl.BlockSpec((1, N), lambda i, k: (0, 0)),
                pl.BlockSpec((tm, N), lambda i, k: (i, 0)),
                pl.BlockSpec((1, N), lambda i, k: (0, 0)),
                pl.BlockSpec((1, N), lambda i, k: (0, 0)),
            ],
            out_specs=pl.BlockSpec((tm, N), lambda i, k: (i, 0)),
            scratch_shapes=[pltpu.VMEM((tm, N), jnp.float32)],
        ),
        compiler_params=pltpu.CompilerParams(
            dimension_semantics=("parallel", "arbitrary")),
    )(x, w_kn, b.reshape(1, N), resid, gamma.reshape(1, N), beta.reshape(1, N))


# ----------------------------------------------------------------------------
# Plain LayerNorm (final encoder norm) — no dummy zeros residual.
# ----------------------------------------------------------------------------
def _layernorm_kernel(x_ref, g_ref, b_ref, o_ref, *, eps):
    h = x_ref[...]
    mu = jnp.mean(h, axis=-1, keepdims=True)
    var = jnp.mean((h - mu) * (h - mu), axis=-1, keepdims=True)
    o_ref[...] = (h - mu) * jax.lax.rsqrt(var + eps) * g_ref[...] + b_ref[...]


def layernorm_pallas(x, gamma, beta, eps=1e-5):
    M, E = x.shape
    tm = _choose_tile(M, 512, 8)
    kernel = functools.partial(_layernorm_kernel, eps=eps)
    return pl.pallas_call(
        kernel,
        out_shape=jax.ShapeDtypeStruct((M, E), jnp.float32),
        grid_spec=pltpu.PrefetchScalarGridSpec(
            num_scalar_prefetch=0,
            grid=(M // tm,),
            in_specs=[
                pl.BlockSpec((tm, E), lambda i: (i, 0)),
                pl.BlockSpec((1, E), lambda i: (0, 0)),
                pl.BlockSpec((1, E), lambda i: (0, 0)),
            ],
            out_specs=pl.BlockSpec((tm, E), lambda i: (i, 0)),
        ),
        compiler_params=pltpu.CompilerParams(
            dimension_semantics=("parallel",)),
    )(x, gamma.reshape(1, E), beta.reshape(1, E))


# ----------------------------------------------------------------------------
# Flash-style causal attention: grid (B*H, q-tile, kv-tile), online softmax,
# causal mask generated in-kernel (matches create_mask used for inference).
# ----------------------------------------------------------------------------
def _flash_attn_kernel(q_ref, k_ref, v_ref, o_ref, m_sc, l_sc, acc_sc,
                       *, scale, tq, tkv):
    qi = pl.program_id(1)
    ki = pl.program_id(2)

    @pl.when(ki == 0)
    def _():
        m_sc[...] = jnp.full_like(m_sc, -jnp.inf)
        l_sc[...] = jnp.zeros_like(l_sc)
        acc_sc[...] = jnp.zeros_like(acc_sc)

    # Skip KV tiles that lie entirely above the causal diagonal.
    @pl.when(ki * tkv <= qi * tq + (tq - 1))
    def _():
        q = q_ref[0].astype(jnp.bfloat16)
        kk = k_ref[0].astype(jnp.bfloat16)
        v = v_ref[0].astype(jnp.bfloat16)
        # QK^T without transposing K: contract the head dim of both operands.
        s = jax.lax.dot_general(
            q, kk, (((1,), (1,)), ((), ())),
            preferred_element_type=jnp.float32) * scale
        row = qi * tq + jax.lax.broadcasted_iota(jnp.int32, (tq, tkv), 0)
        col = ki * tkv + jax.lax.broadcasted_iota(jnp.int32, (tq, tkv), 1)
        s = jnp.where(col <= row, s, -1e30)
        m_new = jnp.maximum(m_sc[...], jnp.max(s, axis=-1, keepdims=True))
        alpha = jnp.exp(m_sc[...] - m_new)
        p = jnp.exp(s - m_new)
        l_sc[...] = alpha * l_sc[...] + jnp.sum(p, axis=-1, keepdims=True)
        acc_sc[...] = alpha * acc_sc[...] + jnp.dot(
            p.astype(jnp.bfloat16), v, preferred_element_type=jnp.float32)
        m_sc[...] = m_new

    @pl.when(ki == pl.num_programs(2) - 1)
    def _():
        o_ref[0] = (acc_sc[...] *
                    pl.reciprocal(l_sc[...], approx=True)).astype(o_ref.dtype)


def flash_attention_pallas(q, k, v, scale):
    BH, S, Dh = q.shape
    tq = _choose_tile(S, 256, 8)
    tkv = _choose_tile(S, 256, 8)
    kernel = functools.partial(_flash_attn_kernel, scale=scale, tq=tq, tkv=tkv)
    return pl.pallas_call(
        kernel,
        out_shape=jax.ShapeDtypeStruct((BH, S, Dh), jnp.float32),
        grid_spec=pltpu.PrefetchScalarGridSpec(
            num_scalar_prefetch=0,
            grid=(BH, S // tq, S // tkv),
            in_specs=[
                pl.BlockSpec((1, tq, Dh), lambda b, qi, ki: (b, qi, 0)),
                pl.BlockSpec((1, tkv, Dh), lambda b, qi, ki: (b, ki, 0)),
                pl.BlockSpec((1, tkv, Dh), lambda b, qi, ki: (b, ki, 0)),
            ],
            out_specs=pl.BlockSpec((1, tq, Dh), lambda b, qi, ki: (b, qi, 0)),
            scratch_shapes=[
                pltpu.VMEM((tq, 1), jnp.float32),    # running max m
                pltpu.VMEM((tq, 1), jnp.float32),    # running denom l
                pltpu.VMEM((tq, Dh), jnp.float32),   # output accumulator
            ],
        ),
        compiler_params=pltpu.CompilerParams(
            dimension_semantics=("parallel", "parallel", "arbitrary")),
    )(q, k, v)


# ----------------------------------------------------------------------------
# Parameter construction (deterministic, mirrors the PyTorch module shapes).
# Linear weights are xavier-initialized in PyTorch's (out, in) layout, then
# pre-transposed to (in, out) and stored in bf16 for MXU consumption.
# ----------------------------------------------------------------------------
def xavier_uniform(key, shape):
    fan_out, fan_in = shape
    limit = math.sqrt(6.0 / (fan_in + fan_out))
    return jax.random.uniform(key, shape, jnp.float32, -limit, limit)


def _mxu_weight(key, out_dim, in_dim):
    w = xavier_uniform(key, (out_dim, in_dim))       # PyTorch (out, in)
    return w.T.astype(jnp.bfloat16)                  # stored (in, out) bf16


def make_positional_encoding(max_len, embed_dim):
    pe = jnp.zeros((max_len, embed_dim), jnp.float32)
    position = jnp.arange(max_len, dtype=jnp.float32)[:, None]
    div_term = jnp.exp(
        jnp.arange(0, embed_dim, 2, dtype=jnp.float32)
        * (-math.log(10000.0) / embed_dim)
    )
    pe = pe.at[:, 0::2].set(jnp.sin(position * div_term))
    pe = pe.at[:, 1::2].set(jnp.cos(position * div_term))
    return pe


def init_params(key, vocab_size, embed_dim, hidden_dim, num_layers, max_len=5000):
    keys = jax.random.split(key, 3 + num_layers * 6)
    params = {
        "embed": jax.random.normal(keys[0], (vocab_size, embed_dim), jnp.float32),
        "pe": make_positional_encoding(max_len, embed_dim),
        "lnf_g": jnp.ones((embed_dim,), jnp.float32),
        "lnf_b": jnp.zeros((embed_dim,), jnp.float32),
        "w_head": _mxu_weight(keys[1], vocab_size, embed_dim),
        "b_head": jnp.zeros((vocab_size,), jnp.float32),
        "layers": [],
    }
    ki = 3
    for _ in range(num_layers):
        layer = {
            "w_qkv": _mxu_weight(keys[ki + 0], 3 * embed_dim, embed_dim),
            "b_qkv": jnp.zeros((3 * embed_dim,), jnp.float32),
            "w_o": _mxu_weight(keys[ki + 1], embed_dim, embed_dim),
            "b_o": jnp.zeros((embed_dim,), jnp.float32),
            "w1": _mxu_weight(keys[ki + 2], hidden_dim, embed_dim),
            "b1": jnp.zeros((hidden_dim,), jnp.float32),
            "w2": _mxu_weight(keys[ki + 3], embed_dim, hidden_dim),
            "b2": jnp.zeros((embed_dim,), jnp.float32),
            "ln1_g": jnp.ones((embed_dim,), jnp.float32),
            "ln1_b": jnp.zeros((embed_dim,), jnp.float32),
            "ln2_g": jnp.ones((embed_dim,), jnp.float32),
            "ln2_b": jnp.zeros((embed_dim,), jnp.float32),
        }
        ki += 6
        params["layers"].append(layer)
    return params


# ----------------------------------------------------------------------------
# Forward pass (TransformerEncoder, post-norm layers, dropout=0.0, causal mask)
# ----------------------------------------------------------------------------
@functools.partial(jax.jit, static_argnums=(2,))
def language_model_forward(tokens, params, num_heads):
    B, S = tokens.shape
    E = params["embed"].shape[1]
    V = params["b_head"].shape[0]
    H = num_heads
    assert E % H == 0
    Dh = E // H
    scale = 1.0 / math.sqrt(Dh)

    # embedding lookup + positional encoding (plain-JAX glue, fused by XLA)
    x = params["embed"][tokens] + params["pe"][:S][None, :, :]   # (B, S, E)
    x2 = x.reshape(B * S, E)

    for layer in params["layers"]:
        # --- self-attention block (post-norm) ---
        qkv = linear_pallas(x2, layer["w_qkv"], layer["b_qkv"])   # (B*S, 3E)
        qkv = qkv.reshape(B, S, 3, H, Dh).transpose(2, 0, 3, 1, 4)
        qh = qkv[0].reshape(B * H, S, Dh)
        kh = qkv[1].reshape(B * H, S, Dh)
        vh = qkv[2].reshape(B * H, S, Dh)
        # TODO(synk): feeding attention directly from the (B*S, 3E) buffer via
        # BlockSpec head offsets needs lane-aligned (>=128) head dims; with
        # small Dh the head split/merge stays as XLA glue under jit.
        attn = flash_attention_pallas(qh, kh, vh, scale)          # (B*H, S, Dh)
        attn = attn.reshape(B, H, S, Dh).transpose(0, 2, 1, 3).reshape(B * S, E)
        # o-proj fused with residual add + LayerNorm
        x2 = linear_residual_layernorm_pallas(
            attn, layer["w_o"], layer["b_o"], x2,
            layer["ln1_g"], layer["ln1_b"])

        # --- feed-forward block (ReLU, post-norm) ---
        h = linear_pallas(x2, layer["w1"], layer["b1"], relu=True)
        # w2 fused with residual add + LayerNorm
        x2 = linear_residual_layernorm_pallas(
            h, layer["w2"], layer["b2"], x2,
            layer["ln2_g"], layer["ln2_b"])

    # final encoder LayerNorm (no dummy residual)
    x2 = layernorm_pallas(x2, params["lnf_g"], params["lnf_b"])
    # vocabulary head
    logits = linear_pallas(x2, params["w_head"], params["b_head"])
    return logits.reshape(B, S, V)


if __name__ == "__main__":
    # small shapes consistent with the module
    vocab_size = 50
    embed_dim = 32
    hidden_dim = 64
    num_heads = 4
    num_layers = 2
    # dropout = 0.0 -> dropout is identity, so eval/train forwards agree
    batch, seq = 2, 8

    key = jax.random.PRNGKey(0)
    kp, kt = jax.random.split(key)
    params = init_params(kp, vocab_size, embed_dim, hidden_dim, num_layers)
    tokens = jax.random.randint(kt, (batch, seq), 0, vocab_size, jnp.int32)

    # causal mask (what create_mask produces for inference) is generated
    # inside the attention kernel, so no dense (S, S) mask array is passed.
    logits = language_model_forward(tokens, params, num_heads)
    logits = jax.block_until_ready(logits)
    assert logits.shape == (batch, seq, vocab_size)
    assert bool(jnp.all(jnp.isfinite(logits)))
    print("KERNEL_OK")
</pallas_src>

<mosaic_0001>
module attributes {stable_mosaic.version = 11 : i64} {
  func.func @_linear_res_ln_kernel(%arg0: i32, %arg1: i32, %arg2: memref<16x32xf32, #tpu.memory_space<vmem>>, %arg3: memref<32x32xbf16, #tpu.memory_space<vmem>>, %arg4: memref<1x32xf32, #tpu.memory_space<vmem>>, %arg5: memref<16x32xf32, #tpu.memory_space<vmem>>, %arg6: memref<1x32xf32, #tpu.memory_space<vmem>>, %arg7: memref<1x32xf32, #tpu.memory_space<vmem>>, %arg8: memref<16x32xf32, #tpu.memory_space<vmem>>, %arg9: memref<16x32xf32, #tpu.memory_space<vmem>>) attributes {dimension_semantics = [#tpu.dimension_semantics<parallel>, #tpu.dimension_semantics<arbitrary>], iteration_bounds = array<i64: 1, 1>, scalar_prefetch = 0 : i64, scratch_operands = 1 : i64, tpu.core_type = #tpu.core_type<tc>, window_params = [{transform_indices = @transform_0, window_bounds = array<i64: 16, 32>}, {transform_indices = @transform_1, window_bounds = array<i64: 32, 32>}, {pipeline_mode = #tpu.pipeline_mode<synchronous>, transform_indices = @transform_2, window_bounds = array<i64: 1, 32>}, {transform_indices = @transform_3, window_bounds = array<i64: 16, 32>}, {pipeline_mode = #tpu.pipeline_mode<synchronous>, transform_indices = @transform_4, window_bounds = array<i64: 1, 32>}, {pipeline_mode = #tpu.pipeline_mode<synchronous>, transform_indices = @transform_5, window_bounds = array<i64: 1, 32>}, {transform_indices = @transform_6, window_bounds = array<i64: 16, 32>}]} {
    %c0_i32 = arith.constant 0 : i32
    %0 = arith.cmpi eq, %arg1, %c0_i32 : i32
    %1 = arith.extui %0 : i1 to i32
    %c0_i32_0 = arith.constant 0 : i32
    %2 = arith.cmpi ne, %1, %c0_i32_0 : i32
    scf.if %2 {
      %cst_10 = arith.constant 0.000000e+00 : f32
      %13 = vector.broadcast %cst_10 : f32 to vector<16x32xf32>
      %c0_11 = arith.constant 0 : index
      %c0_12 = arith.constant 0 : index
      %14 = vector.load %arg9[%c0_11, %c0_12] : memref<16x32xf32, #tpu.memory_space<vmem>>, vector<16x32xf32>
      tpu.vector_store %arg9[%c0_11, %c0_12], %13 {strides = array<i32>} : memref<16x32xf32, #tpu.memory_space<vmem>>, vector<16x32xf32>,
    } else {
    }
    %c0 = arith.constant 0 : index
    %c0_1 = arith.constant 0 : index
    %3 = vector.load %arg9[%c0, %c0_1] : memref<16x32xf32, #tpu.memory_space<vmem>>, vector<16x32xf32>
    %c0_2 = arith.constant 0 : index
    %c0_3 = arith.constant 0 : index
    %4 = vector.load %arg2[%c0_2, %c0_3] : memref<16x32xf32, #tpu.memory_space<vmem>>, vector<16x32xf32>
    %5 = arith.truncf %4 : vector<16x32xf32> to vector<16x32xbf16>
    %c0_4 = arith.constant 0 : index
    %c0_5 = arith.constant 0 : index
    %6 = vector.load %arg3[%c0_4, %c0_5] : memref<32x32xbf16, #tpu.memory_space<vmem>>, vector<32x32xbf16>
    %cst = arith.constant dense<0.000000e+00> : vector<16x32xf32>
    %7 = tpu.matmul %5, %6, %cst {dimension_numbers = #tpu.dot_dimension_numbers<[1], [0], [0], [1], [0, 0, 1, 1], [], []>} : vector<16x32xbf16>, vector<32x32xbf16>, vector<16x32xf32> -> vector<16x32xf32>
    %8 = arith.addf %3, %7 : vector<16x32xf32>
    %c0_6 = arith.constant 0 : index
    %c0_7 = arith.constant 0 : index
    %9 = vector.load %arg9[%c0_6, %c0_7] : memref<16x32xf32, #tpu.memory_space<vmem>>, vector<16x32xf32>
    tpu.vector_store %arg9[%c0_6, %c0_7], %8 {strides = array<i32>} : memref<16x32xf32, #tpu.memory_space<vmem>>, vector<16x32xf32>,
    %c0_i32_8 = arith.constant 0 : i32
    %10 = arith.cmpi eq, %arg1, %c0_i32_8 : i32
    %11 = arith.extui %10 : i1 to i32
    %c0_i32_9 = arith.constant 0 : i32
    %12 = arith.cmpi ne, %11, %c0_i32_9 : i32
    scf.if %12 {
      %c0_10 = arith.constant 0 : index
      %c0_11 = arith.constant 0 : index
      %13 = vector.load %arg9[%c0_10, %c0_11] : memref<16x32xf32, #tpu.memory_space<vmem>>, vector<16x32xf32>
      %c0_12 = arith.constant 0 : index
      %c0_13 = arith.constant 0 : index
      %14 = vector.load %arg4[%c0_12, %c0_13] : memref<1x32xf32, #tpu.memory_space<vmem>>, vector<1x32xf32>
      %15 = vector.broadcast %14 : vector<1x32xf32> to vector<16x32xf32>
      %16 = arith.addf %13, %15 : vector<16x32xf32>
      %c0_14 = arith.constant 0 : index
      %c0_15 = arith.constant 0 : index
      %17 = vector.load %arg5[%c0_14, %c0_15] : memref<16x32xf32, #tpu.memory_space<vmem>>, vector<16x32xf32>
      %18 = arith.addf %16, %17 : vector<16x32xf32>
      %cst_16 = arith.constant dense<0.000000e+00> : vector<16xf32>
      %19 = vector.multi_reduction <add>, %18, %cst_16 [1] : vector<16x32xf32> to vector<16xf32>
      %20 = vector.shape_cast %19 : vector<16xf32> to vector<16x1xf32>
      %cst_17 = arith.constant 3.200000e+01 : f32
      %21 = vector.broadcast %cst_17 : f32 to vector<16x1xf32>
      %22 = arith.divf %20, %21 : vector<16x1xf32>
      %23 = vector.broadcast %22 : vector<16x1xf32> to vector<16x32xf32>
      %24 = arith.subf %18, %23 : vector<16x32xf32>
      %25 = vector.broadcast %22 : vector<16x1xf32> to vector<16x32xf32>
      %26 = arith.subf %18, %25 : vector<16x32xf32>
      %27 = arith.mulf %24, %26 : vector<16x32xf32>
      %cst_18 = arith.constant dense<0.000000e+00> : vector<16xf32>
      %28 = vector.multi_reduction <add>, %27, %cst_18 [1] : vector<16x32xf32> to vector<16xf32>
      %29 = vector.shape_cast %28 : vector<16xf32> to vector<16x1xf32>
      %cst_19 = arith.constant 3.200000e+01 : f32
      %30 = vector.broadcast %cst_19 : f32 to vector<16x1xf32>
      %31 = arith.divf %29, %30 : vector<16x1xf32>
      %32 = vector.broadcast %22 : vector<16x1xf32> to vector<16x32xf32>
      %33 = arith.subf %18, %32 : vector<16x32xf32>
      %cst_20 = arith.constant 9.99999974E-6 : f32
      %34 = vector.broadcast %cst_20 : f32 to vector<16x1xf32>
      %35 = arith.addf %31, %34 : vector<16x1xf32>
      %36 = math.rsqrt %35 : vector<16x1xf32>
      %37 = vector.broadcast %36 : vector<16x1xf32> to vector<16x32xf32>
      %38 = arith.mulf %33, %37 : vector<16x32xf32>
      %c0_21 = arith.constant 0 : index
      %c0_22 = arith.constant 0 : index
      %39 = vector.load %arg6[%c0_21, %c0_22] : memref<1x32xf32, #tpu.memory_space<vmem>>, vector<1x32xf32>
      %40 = vector.broadcast %39 : vector<1x32xf32> to vector<16x32xf32>
      %41 = arith.mulf %38, %40 : vector<16x32xf32>
      %c0_23 = arith.constant 0 : index
      %c0_24 = arith.constant 0 : index
      %42 = vector.load %arg7[%c0_23, %c0_24] : memref<1x32xf32, #tpu.memory_space<vmem>>, vector<1x32xf32>
      %43 = vector.broadcast %42 : vector<1x32xf32> to vector<16x32xf32>
      %44 = arith.addf %41, %43 : vector<16x32xf32>
      %c0_25 = arith.constant 0 : index
      %c0_26 = arith.constant 0 : index
      %45 = vector.load %arg8[%c0_25, %c0_26] : memref<16x32xf32, #tpu.memory_space<vmem>>, vector<16x32xf32>
      tpu.vector_store %arg8[%c0_25, %c0_26], %44 {strides = array<i32>} : memref<16x32xf32, #tpu.memory_space<vmem>>, vector<16x32xf32>,
    } else {
    }
    return
  }
  func.func @transform_0(%arg0: i32, %arg1: i32) -> (i32, i32) {
    %c0_i32 = arith.constant 0 : i32
    return %arg0, %arg1 : i32, i32
  }
  func.func @transform_1(%arg0: i32, %arg1: i32) -> (i32, i32) {
    %c0_i32 = arith.constant 0 : i32
    %c0_i32_0 = arith.constant 0 : i32
    return %arg1, %c0_i32 : i32, i32
  }
  func.func @transform_2(%arg0: i32, %arg1: i32) -> (i32, i32) {
    %c0_i32 = arith.constant 0 : i32
    %c0_i32_0 = arith.constant 0 : i32
    %c0_i32_1 = arith.constant 0 : i32
    return %c0_i32, %c0_i32_0 : i32, i32
  }
  func.func @transform_3(%arg0: i32, %arg1: i32) -> (i32, i32) {
    %c0_i32 = arith.constant 0 : i32
    %c0_i32_0 = arith.constant 0 : i32
    return %arg0, %c0_i32 : i32, i32
  }
  func.func @transform_4(%arg0: i32, %arg1: i32) -> (i32, i32) {
    %c0_i32 = arith.constant 0 : i32
    %c0_i32_0 = arith.constant 0 : i32
    %c0_i32_1 = arith.constant 0 : i32
    return %c0_i32, %c0_i32_0 : i32, i32
  }
  func.func @transform_5(%arg0: i32, %arg1: i32) -> (i32, i32) {
    %c0_i32 = arith.constant 0 : i32
    %c0_i32_0 = arith.constant 0 : i32
    %c0_i32_1 = arith.constant 0 : i32
    return %c0_i32, %c0_i32_0 : i32, i32
  }
  func.func @transform_6(%arg0: i32, %arg1: i32) -> (i32, i32) {
    %c0_i32 = arith.constant 0 : i32
    %c0_i32_0 = arith.constant 0 : i32
    return %arg0, %c0_i32 : i32, i32
  }
}

module attributes {stable_mosaic.version = 11 : i64} {
  func.func @_linear_kernel(%arg0: i32, %arg1: i32, %arg2: i32, %arg3: memref<16x32xf32, #tpu.memory_space<vmem>>, %arg4: memref<32x96xbf16, #tpu.memory_space<vmem>>, %arg5: memref<1x96xf32, #tpu.memory_space<vmem>>, %arg6: memref<16x96xf32, #tpu.memory_space<vmem>>, %arg7: memref<16x96xf32, #tpu.memory_space<vmem>>) attributes {dimension_semantics = [#tpu.dimension_semantics<parallel>, #tpu.dimension_semantics<parallel>, #tpu.dimension_semantics<arbitrary>], iteration_bounds = array<i64: 1, 1, 1>, scalar_prefetch = 0 : i64, scratch_operands = 1 : i64, tpu.core_type = #tpu.core_type<tc>, window_params = [{transform_indices = @transform_0, window_bounds = array<i64: 16, 32>}, {transform_indices = @transform_1, window_bounds = array<i64: 32, 96>}, {transform_indices = @transform_2, window_bounds = array<i64: 1, 96>}, {transform_indices = @transform_3, window_bounds = array<i64: 16, 96>}]} {
    %c0_i32 = arith.constant 0 : i32
    %0 = arith.cmpi eq, %arg2, %c0_i32 : i32
    %1 = arith.extui %0 : i1 to i32
    %c0_i32_0 = arith.constant 0 : i32
    %2 = arith.cmpi ne, %1, %c0_i32_0 : i32
    scf.if %2 {
      %cst_10 = arith.constant 0.000000e+00 : f32
      %13 = vector.broadcast %cst_10 : f32 to vector<16x96xf32>
      %c0_11 = arith.constant 0 : index
      %c0_12 = arith.constant 0 : index
      %14 = vector.load %arg7[%c0_11, %c0_12] : memref<16x96xf32, #tpu.memory_space<vmem>>, vector<16x96xf32>
      tpu.vector_store %arg7[%c0_11, %c0_12], %13 {strides = array<i32>} : memref<16x96xf32, #tpu.memory_space<vmem>>, vector<16x96xf32>,
    } else {
    }
    %c0 = arith.constant 0 : index
    %c0_1 = arith.constant 0 : index
    %3 = vector.load %arg7[%c0, %c0_1] : memref<16x96xf32, #tpu.memory_space<vmem>>, vector<16x96xf32>
    %c0_2 = arith.constant 0 : index
    %c0_3 = arith.constant 0 : index
    %4 = vector.load %arg3[%c0_2, %c0_3] : memref<16x32xf32, #tpu.memory_space<vmem>>, vector<16x32xf32>
    %5 = arith.truncf %4 : vector<16x32xf32> to vector<16x32xbf16>
    %c0_4 = arith.constant 0 : index
    %c0_5 = arith.constant 0 : index
    %6 = vector.load %arg4[%c0_4, %c0_5] : memref<32x96xbf16, #tpu.memory_space<vmem>>, vector<32x96xbf16>
    %cst = arith.constant dense<0.000000e+00> : vector<16x96xf32>
    %7 = tpu.matmul %5, %6, %cst {dimension_numbers = #tpu.dot_dimension_numbers<[1], [0], [0], [1], [0, 0, 1, 1], [], []>} : vector<16x32xbf16>, vector<32x96xbf16>, vector<16x96xf32> -> vector<16x96xf32>
    %8 = arith.addf %3, %7 : vector<16x96xf32>
    %c0_6 = arith.constant 0 : index
    %c0_7 = arith.constant 0 : index
    %9 = vector.load %arg7[%c0_6, %c0_7] : memref<16x96xf32, #tpu.memory_space<vmem>>, vector<16x96xf32>
    tpu.vector_store %arg7[%c0_6, %c0_7], %8 {strides = array<i32>} : memref<16x96xf32, #tpu.memory_space<vmem>>, vector<16x96xf32>,
    %c0_i32_8 = arith.constant 0 : i32
    %10 = arith.cmpi eq, %arg2, %c0_i32_8 : i32
    %11 = arith.extui %10 : i1 to i32
    %c0_i32_9 = arith.constant 0 : i32
    %12 = arith.cmpi ne, %11, %c0_i32_9 : i32
    scf.if %12 {
      %c0_10 = arith.constant 0 : index
      %c0_11 = arith.constant 0 : index
      %13 = vector.load %arg7[%c0_10, %c0_11] : memref<16x96xf32, #tpu.memory_space<vmem>>, vector<16x96xf32>
      %c0_12 = arith.constant 0 : index
      %c0_13 = arith.constant 0 : index
      %14 = vector.load %arg5[%c0_12, %c0_13] : memref<1x96xf32, #tpu.memory_space<vmem>>, vector<1x96xf32>
      %15 = vector.broadcast %14 : vector<1x96xf32> to vector<16x96xf32>
      %16 = arith.addf %13, %15 : vector<16x96xf32>
      %c0_14 = arith.constant 0 : index
      %c0_15 = arith.constant 0 : index
      %17 = vector.load %arg6[%c0_14, %c0_15] : memref<16x96xf32, #tpu.memory_space<vmem>>, vector<16x96xf32>
      tpu.vector_store %arg6[%c0_14, %c0_15], %16 {strides = array<i32>} : memref<16x96xf32, #tpu.memory_space<vmem>>, vector<16x96xf32>,
    } else {
    }
    return
  }
  func.func @transform_0(%arg0: i32, %arg1: i32, %arg2: i32) -> (i32, i32) {
    %c0_i32 = arith.constant 0 : i32
    return %arg0, %arg2 : i32, i32
  }
  func.func @transform_1(%arg0: i32, %arg1: i32, %arg2: i32) -> (i32, i32) {
    %c0_i32 = arith.constant 0 : i32
    return %arg2, %arg1 : i32, i32
  }
  func.func @transform_2(%arg0: i32, %arg1: i32, %arg2: i32) -> (i32, i32) {
    %c0_i32 = arith.constant 0 : i32
    %c0_i32_0 = arith.constant 0 : i32
    return %c0_i32, %arg1 : i32, i32
  }
  func.func @transform_3(%arg0: i32, %arg1: i32, %arg2: i32) -> (i32, i32) {
    %c0_i32 = arith.constant 0 : i32
    return %arg0, %arg1 : i32, i32
  }
}

module attributes {stable_mosaic.version = 11 : i64} {
  func.func @_flash_attn_kernel(%arg0: i32, %arg1: i32, %arg2: i32, %arg3: memref<1x8x8xf32, #tpu.memory_space<vmem>>, %arg4: memref<1x8x8xf32, #tpu.memory_space<vmem>>, %arg5: memref<1x8x8xf32, #tpu.memory_space<vmem>>, %arg6: memref<1x8x8xf32, #tpu.memory_space<vmem>>, %arg7: memref<8x1xf32, #tpu.memory_space<vmem>>, %arg8: memref<8x1xf32, #tpu.memory_space<vmem>>, %arg9: memref<8x8xf32, #tpu.memory_space<vmem>>) attributes {dimension_semantics = [#tpu.dimension_semantics<parallel>, #tpu.dimension_semantics<parallel>, #tpu.dimension_semantics<arbitrary>], iteration_bounds = array<i64: 8, 1, 1>, scalar_prefetch = 0 : i64, scratch_operands = 3 : i64, tpu.core_type = #tpu.core_type<tc>, window_params = [{transform_indices = @transform_0, window_bounds = array<i64: 1, 8, 8>}, {transform_indices = @transform_1, window_bounds = array<i64: 1, 8, 8>}, {transform_indices = @transform_2, window_bounds = array<i64: 1, 8, 8>}, {transform_indices = @transform_3, window_bounds = array<i64: 1, 8, 8>}]} {
    %c0_i32 = arith.constant 0 : i32
    %0 = arith.cmpi eq, %arg2, %c0_i32 : i32
    %1 = arith.extui %0 : i1 to i32
    %c0_i32_0 = arith.constant 0 : i32
    %2 = arith.cmpi ne, %1, %c0_i32_0 : i32
    scf.if %2 {
      %cst = arith.constant 0xFF800000 : f32
      %12 = vector.broadcast %cst : f32 to vector<8x1xf32>
      %c0 = arith.constant 0 : index
      %c0_5 = arith.constant 0 : index
      %13 = vector.load %arg7[%c0, %c0_5] : memref<8x1xf32, #tpu.memory_space<vmem>>, vector<8x1xf32>
      tpu.vector_store %arg7[%c0, %c0_5], %12 {strides = array<i32>} : memref<8x1xf32, #tpu.memory_space<vmem>>, vector<8x1xf32>,
      %cst_6 = arith.constant 0.000000e+00 : f32
      %14 = vector.broadcast %cst_6 : f32 to vector<8x1xf32>
      %c0_7 = arith.constant 0 : index
      %c0_8 = arith.constant 0 : index
      %15 = vector.load %arg8[%c0_7, %c0_8] : memref<8x1xf32, #tpu.memory_space<vmem>>, vector<8x1xf32>
      tpu.vector_store %arg8[%c0_7, %c0_8], %14 {strides = array<i32>} : memref<8x1xf32, #tpu.memory_space<vmem>>, vector<8x1xf32>,
      %cst_9 = arith.constant 0.000000e+00 : f32
      %16 = vector.broadcast %cst_9 : f32 to vector<8x8xf32>
      %c0_10 = arith.constant 0 : index
      %c0_11 = arith.constant 0 : index
      %17 = vector.load %arg9[%c0_10, %c0_11] : memref<8x8xf32, #tpu.memory_space<vmem>>, vector<8x8xf32>
      tpu.vector_store %arg9[%c0_10, %c0_11], %16 {strides = array<i32>} : memref<8x8xf32, #tpu.memory_space<vmem>>, vector<8x8xf32>,
    } else {
    }
    %c8_i32 = arith.constant 8 : i32
    %3 = arith.muli %arg2, %c8_i32 : i32
    %c8_i32_1 = arith.constant 8 : i32
    %4 = arith.muli %arg1, %c8_i32_1 : i32
    %c7_i32 = arith.constant 7 : i32
    %5 = arith.addi %4, %c7_i32 : i32
    %6 = arith.cmpi sle, %3, %5 : i32
    %7 = arith.extui %6 : i1 to i32
    %c0_i32_2 = arith.constant 0 : i32
    %8 = arith.cmpi ne, %7, %c0_i32_2 : i32
    scf.if %8 {
      %c0 = arith.constant 0 : index
      %c0_5 = arith.constant 0 : index
      %c0_6 = arith.constant 0 : index
      %12 = vector.load %arg3[%c0, %c0_5, %c0_6] : memref<1x8x8xf32, #tpu.memory_space<vmem>>, vector<1x8x8xf32>
      %13 = vector.shape_cast %12 : vector<1x8x8xf32> to vector<8x8xf32>
      %14 = arith.truncf %13 : vector<8x8xf32> to vector<8x8xbf16>
      %c0_7 = arith.constant 0 : index
      %c0_8 = arith.constant 0 : index
      %c0_9 = arith.constant 0 : index
      %15 = vector.load %arg4[%c0_7, %c0_8, %c0_9] : memref<1x8x8xf32, #tpu.memory_space<vmem>>, vector<1x8x8xf32>
      %16 = vector.shape_cast %15 : vector<1x8x8xf32> to vector<8x8xf32>
      %17 = arith.truncf %16 : vector<8x8xf32> to vector<8x8xbf16>
      %c0_10 = arith.constant 0 : index
      %c0_11 = arith.constant 0 : index
      %c0_12 = arith.constant 0 : index
      %18 = vector.load %arg5[%c0_10, %c0_11, %c0_12] : memref<1x8x8xf32, #tpu.memory_space<vmem>>, vector<1x8x8xf32>
      %19 = vector.shape_cast %18 : vector<1x8x8xf32> to vector<8x8xf32>
      %20 = arith.truncf %19 : vector<8x8xf32> to vector<8x8xbf16>
      %cst = arith.constant dense<0.000000e+00> : vector<8x8xf32>
      %21 = tpu.matmul %14, %17, %cst {dimension_numbers = #tpu.dot_dimension_numbers<[1], [1], [0], [0], [0, 0, 1, 0], [], []>} : vector<8x8xbf16>, vector<8x8xbf16>, vector<8x8xf32> -> vector<8x8xf32>
      %cst_13 = arith.constant 0.353553385 : f32
      %22 = vector.broadcast %cst_13 : f32 to vector<8x8xf32>
      %23 = arith.mulf %21, %22 : vector<8x8xf32>
      %c8_i32_14 = arith.constant 8 : i32
      %24 = arith.muli %arg1, %c8_i32_14 : i32
      %25 = tpu.iota {dimensions = array<i32: 0>} : vector<8x8xi32>
      %26 = vector.broadcast %24 : i32 to vector<8x8xi32>
      %27 = arith.addi %26, %25 : vector<8x8xi32>
      %c8_i32_15 = arith.constant 8 : i32
      %28 = arith.muli %arg2, %c8_i32_15 : i32
      %29 = tpu.iota {dimensions = array<i32: 1>} : vector<8x8xi32>
      %30 = vector.broadcast %28 : i32 to vector<8x8xi32>
      %31 = arith.addi %30, %29 : vector<8x8xi32>
      %32 = arith.cmpi sle, %31, %27 : vector<8x8xi32>
      %cst_16 = arith.constant -1.000000e+30 : f32
      %33 = vector.broadcast %cst_16 : f32 to vector<8x8xf32>
      %34 = arith.select %32, %23, %33 : vector<8x8xi1>, vector<8x8xf32>
      %c0_17 = arith.constant 0 : index
      %c0_18 = arith.constant 0 : index
      %35 = vector.load %arg7[%c0_17, %c0_18] : memref<8x1xf32, #tpu.memory_space<vmem>>, vector<8x1xf32>
      %cst_19 = arith.constant dense<0xFF800000> : vector<8xf32>
      %36 = vector.multi_reduction <maximumf>, %34, %cst_19 [1] : vector<8x8xf32> to vector<8xf32>
      %37 = vector.shape_cast %36 : vector<8xf32> to vector<8x1xf32>
      %38 = arith.maximumf %35, %37 : vector<8x1xf32>
      %c0_20 = arith.constant 0 : index
      %c0_21 = arith.constant 0 : index
      %39 = vector.load %arg7[%c0_20, %c0_21] : memref<8x1xf32, #tpu.memory_space<vmem>>, vector<8x1xf32>
      %40 = arith.subf %39, %38 : vector<8x1xf32>
      %41 = math.exp %40 : vector<8x1xf32>
      %42 = vector.broadcast %38 : vector<8x1xf32> to vector<8x8xf32>
      %43 = arith.subf %34, %42 : vector<8x8xf32>
      %44 = math.exp %43 : vector<8x8xf32>
      %c0_22 = arith.constant 0 : index
      %c0_23 = arith.constant 0 : index
      %45 = vector.load %arg8[%c0_22, %c0_23] : memref<8x1xf32, #tpu.memory_space<vmem>>, vector<8x1xf32>
      %46 = arith.mulf %41, %45 : vector<8x1xf32>
      %cst_24 = arith.constant dense<0.000000e+00> : vector<8xf32>
      %47 = vector.multi_reduction <add>, %44, %cst_24 [1] : vector<8x8xf32> to vector<8xf32>
      %48 = vector.shape_cast %47 : vector<8xf32> to vector<8x1xf32>
      %49 = arith.addf %46, %48 : vector<8x1xf32>
      %c0_25 = arith.constant 0 : index
      %c0_26 = arith.constant 0 : index
      %50 = vector.load %arg8[%c0_25, %c0_26] : memref<8x1xf32, #tpu.memory_space<vmem>>, vector<8x1xf32>
      tpu.vector_store %arg8[%c0_25, %c0_26], %49 {strides = array<i32>} : memref<8x1xf32, #tpu.memory_space<vmem>>, vector<8x1xf32>,
      %c0_27 = arith.constant 0 : index
      %c0_28 = arith.constant 0 : index
      %51 = vector.load %arg9[%c0_27, %c0_28] : memref<8x8xf32, #tpu.memory_space<vmem>>, vector<8x8xf32>
      %52 = vector.broadcast %41 : vector<8x1xf32> to vector<8x8xf32>
      %53 = arith.mulf %52, %51 : vector<8x8xf32>
      %54 = arith.truncf %44 : vector<8x8xf32> to vector<8x8xbf16>
      %cst_29 = arith.constant dense<0.000000e+00> : vector<8x8xf32>
      %55 = tpu.matmul %54, %20, %cst_29 {dimension_numbers = #tpu.dot_dimension_numbers<[1], [0], [0], [1], [0, 0, 1, 1], [], []>} : vector<8x8xbf16>, vector<8x8xbf16>, vector<8x8xf32> -> vector<8x8xf32>
      %56 = arith.addf %53, %55 : vector<8x8xf32>
      %c0_30 = arith.constant 0 : index
      %c0_31 = arith.constant 0 : index
      %57 = vector.load %arg9[%c0_30, %c0_31] : memref<8x8xf32, #tpu.memory_space<vmem>>, vector<8x8xf32>
      tpu.vector_store %arg9[%c0_30, %c0_31], %56 {strides = array<i32>} : memref<8x8xf32, #tpu.memory_space<vmem>>, vector<8x8xf32>,
      %c0_32 = arith.constant 0 : index
      %c0_33 = arith.constant 0 : index
      %58 = vector.load %arg7[%c0_32, %c0_33] : memref<8x1xf32, #tpu.memory_space<vmem>>, vector<8x1xf32>
      tpu.vector_store %arg7[%c0_32, %c0_33], %38 {strides = array<i32>} : memref<8x1xf32, #tpu.memory_space<vmem>>, vector<8x1xf32>,
    } else {
    }
    %c0_i32_3 = arith.constant 0 : i32
    %9 = arith.cmpi eq, %arg2, %c0_i32_3 : i32
    %10 = arith.extui %9 : i1 to i32
    %c0_i32_4 = arith.constant 0 : i32
    %11 = arith.cmpi ne, %10, %c0_i32_4 : i32
    scf.if %11 {
      %c0 = arith.constant 0 : index
      %c0_5 = arith.constant 0 : index
      %12 = vector.load %arg9[%c0, %c0_5] : memref<8x8xf32, #tpu.memory_space<vmem>>, vector<8x8xf32>
      %c0_6 = arith.constant 0 : index
      %c0_7 = arith.constant 0 : index
      %13 = vector.load %arg8[%c0_6, %c0_7] : memref<8x1xf32, #tpu.memory_space<vmem>>, vector<8x1xf32>
      %14 = tpu.reciprocal %13 {approx = true} : vector<8x1xf32> -> vector<8x1xf32>
      %15 = vector.broadcast %14 : vector<8x1xf32> to vector<8x8xf32>
      %16 = arith.mulf %12, %15 : vector<8x8xf32>
      %c0_8 = arith.constant 0 : index
      %c0_9 = arith.constant 0 : index
      %c0_10 = arith.constant 0 : index
      %17 = vector.load %arg6[%c0_8, %c0_9, %c0_10] : memref<1x8x8xf32, #tpu.memory_space<vmem>>, vector<1x8x8xf32>
      %18 = vector.shape_cast %17 : vector<1x8x8xf32> to vector<8x8xf32>
      %19 = vector.shape_cast %16 : vector<8x8xf32> to vector<1x8x8xf32>
      tpu.vector_store %arg6[%c0_8, %c0_9, %c0_10], %19 {strides = array<i32>} : memref<1x8x8xf32, #tpu.memory_space<vmem>>, vector<1x8x8xf32>,
    } else {
    }
    return
  }
  func.func @transform_0(%arg0: i32, %arg1: i32, %arg2: i32) -> (i32, i32, i32) {
    %c0_i32 = arith.constant 0 : i32
    %c0_i32_0 = arith.constant 0 : i32
    return %arg0, %arg1, %c0_i32 : i32, i32, i32
  }
  func.func @transform_1(%arg0: i32, %arg1: i32, %arg2: i32) -> (i32, i32, i32) {
    %c0_i32 = arith.constant 0 : i32
    %c0_i32_0 = arith.constant 0 : i32
    return %arg0, %arg2, %c0_i32 : i32, i32, i32
  }
  func.func @transform_2(%arg0: i32, %arg1: i32, %arg2: i32) -> (i32, i32, i32) {
    %c0_i32 = arith.constant 0 : i32
    %c0_i32_0 = arith.constant 0 : i32
    return %arg0, %arg2, %c0_i32 : i32, i32, i32
  }
  func.func @transform_3(%arg0: i32, %arg1: i32, %arg2: i32) -> (i32, i32, i32) {
    %c0_i32 = arith.constant 0 : i32
    %c0_i32_0 = arith.constant 0 : i32
    return %arg0, %arg1, %c0_i32 : i32, i32, i32
  }
}

module attributes {stable_mosaic.version = 11 : i64} {
  func.func @_linear_kernel(%arg0: i32, %arg1: i32, %arg2: i32, %arg3: memref<16x32xf32, #tpu.memory_space<vmem>>, %arg4: memref<32x64xbf16, #tpu.memory_space<vmem>>, %arg5: memref<1x64xf32, #tpu.memory_space<vmem>>, %arg6: memref<16x64xf32, #tpu.memory_space<vmem>>, %arg7: memref<16x64xf32, #tpu.memory_space<vmem>>) attributes {dimension_semantics = [#tpu.dimension_semantics<parallel>, #tpu.dimension_semantics<parallel>, #tpu.dimension_semantics<arbitrary>], iteration_bounds = array<i64: 1, 1, 1>, scalar_prefetch = 0 : i64, scratch_operands = 1 : i64, tpu.core_type = #tpu.core_type<tc>, window_params = [{transform_indices = @transform_0, window_bounds = array<i64: 16, 32>}, {transform_indices = @transform_1, window_bounds = array<i64: 32, 64>}, {transform_indices = @transform_2, window_bounds = array<i64: 1, 64>}, {transform_indices = @transform_3, window_bounds = array<i64: 16, 64>}]} {
    %c0_i32 = arith.constant 0 : i32
    %0 = arith.cmpi eq, %arg2, %c0_i32 : i32
    %1 = arith.extui %0 : i1 to i32
    %c0_i32_0 = arith.constant 0 : i32
    %2 = arith.cmpi ne, %1, %c0_i32_0 : i32
    scf.if %2 {
      %cst_10 = arith.constant 0.000000e+00 : f32
      %13 = vector.broadcast %cst_10 : f32 to vector<16x64xf32>
      %c0_11 = arith.constant 0 : index
      %c0_12 = arith.constant 0 : index
      %14 = vector.load %arg7[%c0_11, %c0_12] : memref<16x64xf32, #tpu.memory_space<vmem>>, vector<16x64xf32>
      tpu.vector_store %arg7[%c0_11, %c0_12], %13 {strides = array<i32>} : memref<16x64xf32, #tpu.memory_space<vmem>>, vector<16x64xf32>,
    } else {
    }
    %c0 = arith.constant 0 : index
    %c0_1 = arith.constant 0 : index
    %3 = vector.load %arg7[%c0, %c0_1] : memref<16x64xf32, #tpu.memory_space<vmem>>, vector<16x64xf32>
    %c0_2 = arith.constant 0 : index
    %c0_3 = arith.constant 0 : index
    %4 = vector.load %arg3[%c0_2, %c0_3] : memref<16x32xf32, #tpu.memory_space<vmem>>, vector<16x32xf32>
    %5 = arith.truncf %4 : vector<16x32xf32> to vector<16x32xbf16>
    %c0_4 = arith.constant 0 : index
    %c0_5 = arith.constant 0 : index
    %6 = vector.load %arg4[%c0_4, %c0_5] : memref<32x64xbf16, #tpu.memory_space<vmem>>, vector<32x64xbf16>
    %cst = arith.constant dense<0.000000e+00> : vector<16x64xf32>
    %7 = tpu.matmul %5, %6, %cst {dimension_numbers = #tpu.dot_dimension_numbers<[1], [0], [0], [1], [0, 0, 1, 1], [], []>} : vector<16x32xbf16>, vector<32x64xbf16>, vector<16x64xf32> -> vector<16x64xf32>
    %8 = arith.addf %3, %7 : vector<16x64xf32>
    %c0_6 = arith.constant 0 : index
    %c0_7 = arith.constant 0 : index
    %9 = vector.load %arg7[%c0_6, %c0_7] : memref<16x64xf32, #tpu.memory_space<vmem>>, vector<16x64xf32>
    tpu.vector_store %arg7[%c0_6, %c0_7], %8 {strides = array<i32>} : memref<16x64xf32, #tpu.memory_space<vmem>>, vector<16x64xf32>,
    %c0_i32_8 = arith.constant 0 : i32
    %10 = arith.cmpi eq, %arg2, %c0_i32_8 : i32
    %11 = arith.extui %10 : i1 to i32
    %c0_i32_9 = arith.constant 0 : i32
    %12 = arith.cmpi ne, %11, %c0_i32_9 : i32
    scf.if %12 {
      %c0_10 = arith.constant 0 : index
      %c0_11 = arith.constant 0 : index
      %13 = vector.load %arg7[%c0_10, %c0_11] : memref<16x64xf32, #tpu.memory_space<vmem>>, vector<16x64xf32>
      %c0_12 = arith.constant 0 : index
      %c0_13 = arith.constant 0 : index
      %14 = vector.load %arg5[%c0_12, %c0_13] : memref<1x64xf32, #tpu.memory_space<vmem>>, vector<1x64xf32>
      %15 = vector.broadcast %14 : vector<1x64xf32> to vector<16x64xf32>
      %16 = arith.addf %13, %15 : vector<16x64xf32>
      %cst_14 = arith.constant 0.000000e+00 : f32
      %17 = vector.broadcast %cst_14 : f32 to vector<16x64xf32>
      %18 = arith.maximumf %16, %17 : vector<16x64xf32>
      %c0_15 = arith.constant 0 : index
      %c0_16 = arith.constant 0 : index
      %19 = vector.load %arg6[%c0_15, %c0_16] : memref<16x64xf32, #tpu.memory_space<vmem>>, vector<16x64xf32>
      tpu.vector_store %arg6[%c0_15, %c0_16], %18 {strides = array<i32>} : memref<16x64xf32, #tpu.memory_space<vmem>>, vector<16x64xf32>,
    } else {
    }
    return
  }
  func.func @transform_0(%arg0: i32, %arg1: i32, %arg2: i32) -> (i32, i32) {
    %c0_i32 = arith.constant 0 : i32
    return %arg0, %arg2 : i32, i32
  }
  func.func @transform_1(%arg0: i32, %arg1: i32, %arg2: i32) -> (i32, i32) {
    %c0_i32 = arith.constant 0 : i32
    return %arg2, %arg1 : i32, i32
  }
  func.func @transform_2(%arg0: i32, %arg1: i32, %arg2: i32) -> (i32, i32) {
    %c0_i32 = arith.constant 0 : i32
    %c0_i32_0 = arith.constant 0 : i32
    return %c0_i32, %arg1 : i32, i32
  }
  func.func @transform_3(%arg0: i32, %arg1: i32, %arg2: i32) -> (i32, i32) {
    %c0_i32 = arith.constant 0 : i32
    return %arg0, %arg1 : i32, i32
  }
}

module attributes {stable_mosaic.version = 11 : i64} {
  func.func @_linear_res_ln_kernel(%arg0: i32, %arg1: i32, %arg2: memref<16x64xf32, #tpu.memory_space<vmem>>, %arg3: memref<64x32xbf16, #tpu.memory_space<vmem>>, %arg4: memref<1x32xf32, #tpu.memory_space<vmem>>, %arg5: memref<16x32xf32, #tpu.memory_space<vmem>>, %arg6: memref<1x32xf32, #tpu.memory_space<vmem>>, %arg7: memref<1x32xf32, #tpu.memory_space<vmem>>, %arg8: memref<16x32xf32, #tpu.memory_space<vmem>>, %arg9: memref<16x32xf32, #tpu.memory_space<vmem>>) attributes {dimension_semantics = [#tpu.dimension_semantics<parallel>, #tpu.dimension_semantics<arbitrary>], iteration_bounds = array<i64: 1, 1>, scalar_prefetch = 0 : i64, scratch_operands = 1 : i64, tpu.core_type = #tpu.core_type<tc>, window_params = [{transform_indices = @transform_0, window_bounds = array<i64: 16, 64>}, {transform_indices = @transform_1, window_bounds = array<i64: 64, 32>}, {pipeline_mode = #tpu.pipeline_mode<synchronous>, transform_indices = @transform_2, window_bounds = array<i64: 1, 32>}, {transform_indices = @transform_3, window_bounds = array<i64: 16, 32>}, {pipeline_mode = #tpu.pipeline_mode<synchronous>, transform_indices = @transform_4, window_bounds = array<i64: 1, 32>}, {pipeline_mode = #tpu.pipeline_mode<synchronous>, transform_indices = @transform_5, window_bounds = array<i64: 1, 32>}, {transform_indices = @transform_6, window_bounds = array<i64: 16, 32>}]} {
    %c0_i32 = arith.constant 0 : i32
    %0 = arith.cmpi eq, %arg1, %c0_i32 : i32
    %1 = arith.extui %0 : i1 to i32
    %c0_i32_0 = arith.constant 0 : i32
    %2 = arith.cmpi ne, %1, %c0_i32_0 : i32
    scf.if %2 {
      %cst_10 = arith.constant 0.000000e+00 : f32
      %13 = vector.broadcast %cst_10 : f32 to vector<16x32xf32>
      %c0_11 = arith.constant 0 : index
      %c0_12 = arith.constant 0 : index
      %14 = vector.load %arg9[%c0_11, %c0_12] : memref<16x32xf32, #tpu.memory_space<vmem>>, vector<16x32xf32>
      tpu.vector_store %arg9[%c0_11, %c0_12], %13 {strides = array<i32>} : memref<16x32xf32, #tpu.memory_space<vmem>>, vector<16x32xf32>,
    } else {
    }
    %c0 = arith.constant 0 : index
    %c0_1 = arith.constant 0 : index
    %3 = vector.load %arg9[%c0, %c0_1] : memref<16x32xf32, #tpu.memory_space<vmem>>, vector<16x32xf32>
    %c0_2 = arith.constant 0 : index
    %c0_3 = arith.constant 0 : index
    %4 = vector.load %arg2[%c0_2, %c0_3] : memref<16x64xf32, #tpu.memory_space<vmem>>, vector<16x64xf32>
    %5 = arith.truncf %4 : vector<16x64xf32> to vector<16x64xbf16>
    %c0_4 = arith.constant 0 : index
    %c0_5 = arith.constant 0 : index
    %6 = vector.load %arg3[%c0_4, %c0_5] : memref<64x32xbf16, #tpu.memory_space<vmem>>, vector<64x32xbf16>
    %cst = arith.constant dense<0.000000e+00> : vector<16x32xf32>
    %7 = tpu.matmul %5, %6, %cst {dimension_numbers = #tpu.dot_dimension_numbers<[1], [0], [0], [1], [0, 0, 1, 1], [], []>} : vector<16x64xbf16>, vector<64x32xbf16>, vector<16x32xf32> -> vector<16x32xf32>
    %8 = arith.addf %3, %7 : vector<16x32xf32>
    %c0_6 = arith.constant 0 : index
    %c0_7 = arith.constant 0 : index
    %9 = vector.load %arg9[%c0_6, %c0_7] : memref<16x32xf32, #tpu.memory_space<vmem>>, vector<16x32xf32>
    tpu.vector_store %arg9[%c0_6, %c0_7], %8 {strides = array<i32>} : memref<16x32xf32, #tpu.memory_space<vmem>>, vector<16x32xf32>,
    %c0_i32_8 = arith.constant 0 : i32
    %10 = arith.cmpi eq, %arg1, %c0_i32_8 : i32
    %11 = arith.extui %10 : i1 to i32
    %c0_i32_9 = arith.constant 0 : i32
    %12 = arith.cmpi ne, %11, %c0_i32_9 : i32
    scf.if %12 {
      %c0_10 = arith.constant 0 : index
      %c0_11 = arith.constant 0 : index
      %13 = vector.load %arg9[%c0_10, %c0_11] : memref<16x32xf32, #tpu.memory_space<vmem>>, vector<16x32xf32>
      %c0_12 = arith.constant 0 : index
      %c0_13 = arith.constant 0 : index
      %14 = vector.load %arg4[%c0_12, %c0_13] : memref<1x32xf32, #tpu.memory_space<vmem>>, vector<1x32xf32>
      %15 = vector.broadcast %14 : vector<1x32xf32> to vector<16x32xf32>
      %16 = arith.addf %13, %15 : vector<16x32xf32>
      %c0_14 = arith.constant 0 : index
      %c0_15 = arith.constant 0 : index
      %17 = vector.load %arg5[%c0_14, %c0_15] : memref<16x32xf32, #tpu.memory_space<vmem>>, vector<16x32xf32>
      %18 = arith.addf %16, %17 : vector<16x32xf32>
      %cst_16 = arith.constant dense<0.000000e+00> : vector<16xf32>
      %19 = vector.multi_reduction <add>, %18, %cst_16 [1] : vector<16x32xf32> to vector<16xf32>
      %20 = vector.shape_cast %19 : vector<16xf32> to vector<16x1xf32>
      %cst_17 = arith.constant 3.200000e+01 : f32
      %21 = vector.broadcast %cst_17 : f32 to vector<16x1xf32>
      %22 = arith.divf %20, %21 : vector<16x1xf32>
      %23 = vector.broadcast %22 : vector<16x1xf32> to vector<16x32xf32>
      %24 = arith.subf %18, %23 : vector<16x32xf32>
      %25 = vector.broadcast %22 : vector<16x1xf32> to vector<16x32xf32>
      %26 = arith.subf %18, %25 : vector<16x32xf32>
      %27 = arith.mulf %24, %26 : vector<16x32xf32>
      %cst_18 = arith.constant dense<0.000000e+00> : vector<16xf32>
      %28 = vector.multi_reduction <add>, %27, %cst_18 [1] : vector<16x32xf32> to vector<16xf32>
      %29 = vector.shape_cast %28 : vector<16xf32> to vector<16x1xf32>
      %cst_19 = arith.constant 3.200000e+01 : f32
      %30 = vector.broadcast %cst_19 : f32 to vector<16x1xf32>
      %31 = arith.divf %29, %30 : vector<16x1xf32>
      %32 = vector.broadcast %22 : vector<16x1xf32> to vector<16x32xf32>
      %33 = arith.subf %18, %32 : vector<16x32xf32>
      %cst_20 = arith.constant 9.99999974E-6 : f32
      %34 = vector.broadcast %cst_20 : f32 to vector<16x1xf32>
      %35 = arith.addf %31, %34 : vector<16x1xf32>
      %36 = math.rsqrt %35 : vector<16x1xf32>
      %37 = vector.broadcast %36 : vector<16x1xf32> to vector<16x32xf32>
      %38 = arith.mulf %33, %37 : vector<16x32xf32>
      %c0_21 = arith.constant 0 : index
      %c0_22 = arith.constant 0 : index
      %39 = vector.load %arg6[%c0_21, %c0_22] : memref<1x32xf32, #tpu.memory_space<vmem>>, vector<1x32xf32>
      %40 = vector.broadcast %39 : vector<1x32xf32> to vector<16x32xf32>
      %41 = arith.mulf %38, %40 : vector<16x32xf32>
      %c0_23 = arith.constant 0 : index
      %c0_24 = arith.constant 0 : index
      %42 = vector.load %arg7[%c0_23, %c0_24] : memref<1x32xf32, #tpu.memory_space<vmem>>, vector<1x32xf32>
      %43 = vector.broadcast %42 : vector<1x32xf32> to vector<16x32xf32>
      %44 = arith.addf %41, %43 : vector<16x32xf32>
      %c0_25 = arith.constant 0 : index
      %c0_26 = arith.constant 0 : index
      %45 = vector.load %arg8[%c0_25, %c0_26] : memref<16x32xf32, #tpu.memory_space<vmem>>, vector<16x32xf32>
      tpu.vector_store %arg8[%c0_25, %c0_26], %44 {strides = array<i32>} : memref<16x32xf32, #tpu.memory_space<vmem>>, vector<16x32xf32>,
    } else {
    }
    return
  }
  func.func @transform_0(%arg0: i32, %arg1: i32) -> (i32, i32) {
    %c0_i32 = arith.constant 0 : i32
    return %arg0, %arg1 : i32, i32
  }
  func.func @transform_1(%arg0: i32, %arg1: i32) -> (i32, i32) {
    %c0_i32 = arith.constant 0 : i32
    %c0_i32_0 = arith.constant 0 : i32
    return %arg1, %c0_i32 : i32, i32
  }
  func.func @transform_2(%arg0: i32, %arg1: i32) -> (i32, i32) {
    %c0_i32 = arith.constant 0 : i32
    %c0_i32_0 = arith.constant 0 : i32
    %c0_i32_1 = arith.constant 0 : i32
    return %c0_i32, %c0_i32_0 : i32, i32
  }
  func.func @transform_3(%arg0: i32, %arg1: i32) -> (i32, i32) {
    %c0_i32 = arith.constant 0 : i32
    %c0_i32_0 = arith.constant 0 : i32
    return %arg0, %c0_i32 : i32, i32
  }
  func.func @transform_4(%arg0: i32, %arg1: i32) -> (i32, i32) {
    %c0_i32 = arith.constant 0 : i32
    %c0_i32_0 = arith.constant 0 : i32
    %c0_i32_1 = arith.constant 0 : i32
    return %c0_i32, %c0_i32_0 : i32, i32
  }
  func.func @transform_5(%arg0: i32, %arg1: i32) -> (i32, i32) {
    %c0_i32 = arith.constant 0 : i32
    %c0_i32_0 = arith.constant 0 : i32
    %c0_i32_1 = arith.constant 0 : i32
    return %c0_i32, %c0_i32_0 : i32, i32
  }
  func.func @transform_6(%arg0: i32, %arg1: i32) -> (i32, i32) {
    %c0_i32 = arith.constant 0 : i32
    %c0_i32_0 = arith.constant 0 : i32
    return %arg0, %c0_i32 : i32, i32
  }
}

module attributes {stable_mosaic.version = 11 : i64} {
  func.func @_layernorm_kernel(%arg0: i32, %arg1: memref<16x32xf32, #tpu.memory_space<vmem>>, %arg2: memref<1x32xf32, #tpu.memory_space<vmem>>, %arg3: memref<1x32xf32, #tpu.memory_space<vmem>>, %arg4: memref<16x32xf32, #tpu.memory_space<vmem>>) attributes {dimension_semantics = [#tpu.dimension_semantics<parallel>], iteration_bounds = array<i64: 1>, scalar_prefetch = 0 : i64, scratch_operands = 0 : i64, tpu.core_type = #tpu.core_type<tc>, window_params = [{transform_indices = @transform_0, window_bounds = array<i64: 16, 32>}, {pipeline_mode = #tpu.pipeline_mode<synchronous>, transform_indices = @transform_1, window_bounds = array<i64: 1, 32>}, {pipeline_mode = #tpu.pipeline_mode<synchronous>, transform_indices = @transform_2, window_bounds = array<i64: 1, 32>}, {transform_indices = @transform_3, window_bounds = array<i64: 16, 32>}]} {
    %c0 = arith.constant 0 : index
    %c0_0 = arith.constant 0 : index
    %0 = vector.load %arg1[%c0, %c0_0] : memref<16x32xf32, #tpu.memory_space<vmem>>, vector<16x32xf32>
    %cst = arith.constant dense<0.000000e+00> : vector<16xf32>
    %1 = vector.multi_reduction <add>, %0, %cst [1] : vector<16x32xf32> to vector<16xf32>
    %2 = vector.shape_cast %1 : vector<16xf32> to vector<16x1xf32>
    %cst_1 = arith.constant 3.200000e+01 : f32
    %3 = vector.broadcast %cst_1 : f32 to vector<16x1xf32>
    %4 = arith.divf %2, %3 : vector<16x1xf32>
    %5 = vector.broadcast %4 : vector<16x1xf32> to vector<16x32xf32>
    %6 = arith.subf %0, %5 : vector<16x32xf32>
    %7 = vector.broadcast %4 : vector<16x1xf32> to vector<16x32xf32>
    %8 = arith.subf %0, %7 : vector<16x32xf32>
    %9 = arith.mulf %6, %8 : vector<16x32xf32>
    %cst_2 = arith.constant dense<0.000000e+00> : vector<16xf32>
    %10 = vector.multi_reduction <add>, %9, %cst_2 [1] : vector<16x32xf32> to vector<16xf32>
    %11 = vector.shape_cast %10 : vector<16xf32> to vector<16x1xf32>
    %cst_3 = arith.constant 3.200000e+01 : f32
    %12 = vector.broadcast %cst_3 : f32 to vector<16x1xf32>
    %13 = arith.divf %11, %12 : vector<16x1xf32>
    %14 = vector.broadcast %4 : vector<16x1xf32> to vector<16x32xf32>
    %15 = arith.subf %0, %14 : vector<16x32xf32>
    %cst_4 = arith.constant 9.99999974E-6 : f32
    %16 = vector.broadcast %cst_4 : f32 to vector<16x1xf32>
    %17 = arith.addf %13, %16 : vector<16x1xf32>
    %18 = math.rsqrt %17 : vector<16x1xf32>
    %19 = vector.broadcast %18 : vector<16x1xf32> to vector<16x32xf32>
    %20 = arith.mulf %15, %19 : vector<16x32xf32>
    %c0_5 = arith.constant 0 : index
    %c0_6 = arith.constant 0 : index
    %21 = vector.load %arg2[%c0_5, %c0_6] : memref<1x32xf32, #tpu.memory_space<vmem>>, vector<1x32xf32>
    %22 = vector.broadcast %21 : vector<1x32xf32> to vector<16x32xf32>
    %23 = arith.mulf %20, %22 : vector<16x32xf32>
    %c0_7 = arith.constant 0 : index
    %c0_8 = arith.constant 0 : index
    %24 = vector.load %arg3[%c0_7, %c0_8] : memref<1x32xf32, #tpu.memory_space<vmem>>, vector<1x32xf32>
    %25 = vector.broadcast %24 : vector<1x32xf32> to vector<16x32xf32>
    %26 = arith.addf %23, %25 : vector<16x32xf32>
    %c0_9 = arith.constant 0 : index
    %c0_10 = arith.constant 0 : index
    %27 = vector.load %arg4[%c0_9, %c0_10] : memref<16x32xf32, #tpu.memory_space<vmem>>, vector<16x32xf32>
    tpu.vector_store %arg4[%c0_9, %c0_10], %26 {strides = array<i32>} : memref<16x32xf32, #tpu.memory_space<vmem>>, vector<16x32xf32>,
    return
  }
  func.func @transform_0(%arg0: i32) -> (i32, i32) {
    %c0_i32 = arith.constant 0 : i32
    %c0_i32_0 = arith.constant 0 : i32
    return %arg0, %c0_i32 : i32, i32
  }
  func.func @transform_1(%arg0: i32) -> (i32, i32) {
    %c0_i32 = arith.constant 0 : i32
    %c0_i32_0 = arith.constant 0 : i32
    %c0_i32_1 = arith.constant 0 : i32
    return %c0_i32, %c0_i32_0 : i32, i32
  }
  func.func @transform_2(%arg0: i32) -> (i32, i32) {
    %c0_i32 = arith.constant 0 : i32
    %c0_i32_0 = arith.constant 0 : i32
    %c0_i32_1 = arith.constant 0 : i32
    return %c0_i32, %c0_i32_0 : i32, i32
  }
  func.func @transform_3(%arg0: i32) -> (i32, i32) {
    %c0_i32 = arith.constant 0 : i32
    %c0_i32_0 = arith.constant 0 : i32
    return %arg0, %c0_i32 : i32, i32
  }
}

module attributes {stable_mosaic.version = 11 : i64} {
  func.func @_linear_kernel(%arg0: i32, %arg1: i32, %arg2: i32, %arg3: memref<16x32xf32, #tpu.memory_space<vmem>>, %arg4: memref<32x50xbf16, #tpu.memory_space<vmem>>, %arg5: memref<1x50xf32, #tpu.memory_space<vmem>>, %arg6: memref<16x50xf32, #tpu.memory_space<vmem>>, %arg7: memref<16x50xf32, #tpu.memory_space<vmem>>) attributes {dimension_semantics = [#tpu.dimension_semantics<parallel>, #tpu.dimension_semantics<parallel>, #tpu.dimension_semantics<arbitrary>], iteration_bounds = array<i64: 1, 1, 1>, scalar_prefetch = 0 : i64, scratch_operands = 1 : i64, tpu.core_type = #tpu.core_type<tc>, window_params = [{transform_indices = @transform_0, window_bounds = array<i64: 16, 32>}, {transform_indices = @transform_1, window_bounds = array<i64: 32, 50>}, {transform_indices = @transform_2, window_bounds = array<i64: 1, 50>}, {transform_indices = @transform_3, window_bounds = array<i64: 16, 50>}]} {
    %c0_i32 = arith.constant 0 : i32
    %0 = arith.cmpi eq, %arg2, %c0_i32 : i32
    %1 = arith.extui %0 : i1 to i32
    %c0_i32_0 = arith.constant 0 : i32
    %2 = arith.cmpi ne, %1, %c0_i32_0 : i32
    scf.if %2 {
      %cst_10 = arith.constant 0.000000e+00 : f32
      %13 = vector.broadcast %cst_10 : f32 to vector<16x50xf32>
      %c0_11 = arith.constant 0 : index
      %c0_12 = arith.constant 0 : index
      %14 = vector.load %arg7[%c0_11, %c0_12] : memref<16x50xf32, #tpu.memory_space<vmem>>, vector<16x50xf32>
      tpu.vector_store %arg7[%c0_11, %c0_12], %13 {strides = array<i32>} : memref<16x50xf32, #tpu.memory_space<vmem>>, vector<16x50xf32>,
    } else {
    }
    %c0 = arith.constant 0 : index
    %c0_1 = arith.constant 0 : index
    %3 = vector.load %arg7[%c0, %c0_1] : memref<16x50xf32, #tpu.memory_space<vmem>>, vector<16x50xf32>
    %c0_2 = arith.constant 0 : index
    %c0_3 = arith.constant 0 : index
    %4 = vector.load %arg3[%c0_2, %c0_3] : memref<16x32xf32, #tpu.memory_space<vmem>>, vector<16x32xf32>
    %5 = arith.truncf %4 : vector<16x32xf32> to vector<16x32xbf16>
    %c0_4 = arith.constant 0 : index
    %c0_5 = arith.constant 0 : index
    %6 = vector.load %arg4[%c0_4, %c0_5] : memref<32x50xbf16, #tpu.memory_space<vmem>>, vector<32x50xbf16>
    %cst = arith.constant dense<0.000000e+00> : vector<16x50xf32>
    %7 = tpu.matmul %5, %6, %cst {dimension_numbers = #tpu.dot_dimension_numbers<[1], [0], [0], [1], [0, 0, 1, 1], [], []>} : vector<16x32xbf16>, vector<32x50xbf16>, vector<16x50xf32> -> vector<16x50xf32>
    %8 = arith.addf %3, %7 : vector<16x50xf32>
    %c0_6 = arith.constant 0 : index
    %c0_7 = arith.constant 0 : index
    %9 = vector.load %arg7[%c0_6, %c0_7] : memref<16x50xf32, #tpu.memory_space<vmem>>, vector<16x50xf32>
    tpu.vector_store %arg7[%c0_6, %c0_7], %8 {strides = array<i32>} : memref<16x50xf32, #tpu.memory_space<vmem>>, vector<16x50xf32>,
    %c0_i32_8 = arith.constant 0 : i32
    %10 = arith.cmpi eq, %arg2, %c0_i32_8 : i32
    %11 = arith.extui %10 : i1 to i32
    %c0_i32_9 = arith.constant 0 : i32
    %12 = arith.cmpi ne, %11, %c0_i32_9 : i32
    scf.if %12 {
      %c0_10 = arith.constant 0 : index
      %c0_11 = arith.constant 0 : index
      %13 = vector.load %arg7[%c0_10, %c0_11] : memref<16x50xf32, #tpu.memory_space<vmem>>, vector<16x50xf32>
      %c0_12 = arith.constant 0 : index
      %c0_13 = arith.constant 0 : index
      %14 = vector.load %arg5[%c0_12, %c0_13] : memref<1x50xf32, #tpu.memory_space<vmem>>, vector<1x50xf32>
      %15 = vector.broadcast %14 : vector<1x50xf32> to vector<16x50xf32>
      %16 = arith.addf %13, %15 : vector<16x50xf32>
      %c0_14 = arith.constant 0 : index
      %c0_15 = arith.constant 0 : index
      %17 = vector.load %arg6[%c0_14, %c0_15] : memref<16x50xf32, #tpu.memory_space<vmem>>, vector<16x50xf32>
      tpu.vector_store %arg6[%c0_14, %c0_15], %16 {strides = array<i32>} : memref<16x50xf32, #tpu.memory_space<vmem>>, vector<16x50xf32>,
    } else {
    }
    return
  }
  func.func @transform_0(%arg0: i32, %arg1: i32, %arg2: i32) -> (i32, i32) {
    %c0_i32 = arith.constant 0 : i32
    return %arg0, %arg2 : i32, i32
  }
  func.func @transform_1(%arg0: i32, %arg1: i32, %arg2: i32) -> (i32, i32) {
    %c0_i32 = arith.constant 0 : i32
    return %arg2, %arg1 : i32, i32
  }
  func.func @transform_2(%arg0: i32, %arg1: i32, %arg2: i32) -> (i32, i32) {
    %c0_i32 = arith.constant 0 : i32
    %c0_i32_0 = arith.constant 0 : i32
    return %c0_i32, %arg1 : i32, i32
  }
  func.func @transform_3(%arg0: i32, %arg1: i32, %arg2: i32) -> (i32, i32) {
    %c0_i32 = arith.constant 0 : i32
    return %arg0, %arg1 : i32, i32
  }
}

</mosaic_0001>

<llo_original>
// kernel: language_model_forward.12
$region0: #{language_model_forward.12}
  #allocation0 [shape = 'u32[]', space=smem, size = 0x4, offset = 0x4, fixed_abs, tag = 'smem constant byte address 0x4 - core index']
  #allocation1 [shape = 'u32[144,128]{1,0:T(1,128)}', space=vmem, size = 0x12000, scoped, tag = 'internal scratch']
  #allocation2 [shape = 'f32[16,96]{1,0:T(8,128)}', space=vmem, size = 0x2000, scoped, tag = 'scratch operand']
  %s0 = inlined_call_operand.vmem [shape: f32[16,32], index: 0, kind: input, shape index: {}]
  %s1 = inlined_call_operand.vmem [shape: bf16[32,96], index: 1, kind: input, shape index: {}]
  %s2 = inlined_call_operand.vmem [shape: f32[1,96], index: 2, kind: input, shape index: {}]
  %s3 = inlined_call_operand.vmem [shape: f32[16,96], index: 3, kind: output, shape index: {}]
  %s4 = sld [smem:[#allocation0]]
  $region30: #{language_model_forward.12} parent=0
    _
  %s6 = ssub.s32 1, %s4
  %s7 = scalar_select 0, %s6, %s4
  // Predicated region
  $region2: #{language_model_forward.12} parent=0 // pred_check
    _
  $region3: #{language_model_forward.12} parent=0 // pred_check_branch
    %9 = sbr.rel (0) target = $region5
  $region4: #{language_model_forward.12} parent=0 // pred_region
    _
  $region5: #{language_model_forward.12} parent=0 // pred_fallthru
    _
  // Predicated region
  $region6: #{language_model_forward.12} parent=0 // pred_check
    _
  $region7: #{language_model_forward.12} parent=0 // pred_check_branch
    %11 = sbr.rel (0) target = $region9
  $region8: #{language_model_forward.12} parent=0 // pred_region
    _
  $region9: #{language_model_forward.12} parent=0 // pred_fallthru
    _
  // Predicated region
  $region10: #{language_model_forward.12} parent=0 // pred_check
    _
  $region11: #{language_model_forward.12} parent=0 // pred_check_branch
    %13 = sbr.rel (0) target = $region13
  $region12: #{language_model_forward.12} parent=0 // pred_region
    _
  $region13: #{language_model_forward.12} parent=0 // pred_fallthru
    _
  %p15 = scmp.eq.s32.totalorder 0, 0
  // Predicated region
  $region14: #{language_model_forward.12} parent=0 // pred_check
    %p16 = pneg %p15
  $region15: #{language_model_forward.12} parent=0 // pred_check_branch
    %18 = sbr.rel (%p16) target = $region17
  $region16: #{language_model_forward.12} parent=0 // pred_region
    %vm19 = vcmask 785408
    %20 = vst.msk [vmem:[#allocation2] sm:$0xff] %vm19, 0.0
    %21 = vst.msk [vmem:[#allocation2 + $0x8] sm:$0xff] %vm19, 0.0
  $region17: #{language_model_forward.12} parent=0 // pred_fallthru
    _
  %v22 = vld [vmem:[#allocation2] sm:$0xff]
  %v23 = vld [vmem:[#allocation2 + $0x8] sm:$0xff]
  %v24 = vld [vmem:[%s0] sm:$0xff]
  %v25 = vld [vmem:[%s0 + $0x8] sm:$0xff]
  %v26 = vpack.c.bf16 %v25, %v24
  %v27 = vld [vmem:[%s1] sm:$0xf]
  %v28 = vld [vmem:[%s1 + $0x4] sm:$0xf]
  %v29 = vld [vmem:[%s1 + $0x8] sm:$0xf]
  %v30 = vld [vmem:[%s1 + $0xc] sm:$0xf]
  %v35 = vunpack.c.l.b16 %v27
  %v36 = vunpack.c.l.b16 %v28
  %v37 = vunpack.c.l.b16 %v29
  %v38 = vunpack.c.l.b16 %v30
  %v39 = vpack.c.b16 %v36, %v35
  %v40 = vpack.c.b16 %v38, %v37
  %vm43 = vcmask 261120
  %v45 = vsel %vm43, %v26, 0
  %47 = vmatprep.subr.bf16.mxu0 0
  %48 = vmatpush1.bf16.msra.mxu0 %v39
  %49 = vmatprep.subr.bf16.mxu0 0
  %50 = vmatpush1.bf16.msra.mxu0 %v40
  %51 = vmatprep.subr.bf16.mxu0 0
  %52 = vmatpush1.bf16.msra.mxu0 0
  %53 = vmatprep.subr.bf16.mxu0 0
  %54 = vmatpush1.bf16.msra.mxu0 0
  %55 = vmatprep.subr.bf16.mxu0 0
  %56 = vmatpush1.bf16.msra.mxu0 0
  %57 = vmatprep.subr.bf16.mxu0 0
  %58 = vmatpush1.bf16.msra.mxu0 0
  %59 = vmatprep.subr.bf16.mxu0 0
  %60 = vmatpush1.bf16.msra.mxu0 0
  %61 = vmatprep.subr.bf16.mxu0 0
  %62 = vmatpush1.bf16.msra.mxu0 0
  %63 = vmatprep.subr.bf16.mxu0 0
  %64 = vmatpush1.bf16.msra.mxu0 0
  %65 = vmatprep.subr.bf16.mxu0 0
  %66 = vmatpush1.bf16.msra.mxu0 0
  %67 = vmatprep.subr.bf16.mxu0 0
  %68 = vmatpush1.bf16.msra.mxu0 0
  %69 = vmatprep.subr.bf16.mxu0 0
  %70 = vmatpush1.bf16.msra.mxu0 0
  %71 = vmatprep.subr.bf16.mxu0 0
  %72 = vmatpush1.bf16.msra.mxu0 0
  %73 = vmatprep.subr.bf16.mxu0 0
  %74 = vmatpush1.bf16.msra.mxu0 0
  %75 = vmatprep.subr.bf16.mxu0 0
  %76 = vmatpush1.bf16.msra.mxu0 0
  %77 = vmatprep.subr.bf16.mxu0 0
  %78 = vmatpush1.bf16.msra.mxu0 0
  %79 = vmatprep.mubr.bf16.mxu0 0
  %80 = vmatmul.mubr.bf16.gmra.mrb[0].mxu0 %v45
  %v81 = vpop.f32.mrb[0].mxu0
  %v82 = vadd.f32 0.0, %v81
  %v83 = vpop.f32.mrb[0].mxu0
  %v84 = vpop.f32.mrb[0].mxu0
  %v85 = vadd.f32 0.0, %v84
  %v86 = vpop.f32.mrb[0].mxu0
  %87 = vdwg.mxu0
  %v88 = vadd.f32 %v22, %v82
  %v89 = vadd.f32 %v23, %v85
  %vm90 = vcmask 785408
  %91 = vst.msk [vmem:[#allocation2] sm:$0xff] %vm90, %v88
  %92 = vst.msk [vmem:[#allocation2 + $0x8] sm:$0xff] %vm90, %v89
  // Predicated region
  $region18: #{language_model_forward.12} parent=0 // pred_check
    %p93 = pneg %p15
  $region19: #{language_model_forward.12} parent=0 // pred_check_branch
    %95 = sbr.rel (%p93) target = $region21
  $region20: #{language_model_forward.12} parent=0 // pred_region
    %v96 = vld [vmem:[#allocation2] sm:$0xff]
    %v97 = vld [vmem:[#allocation2 + $0x8] sm:$0xff]
    %v98 = vld [vmem:[%s2] sm:$0x1]
    %v100 = vlaneseq
    %v101 = vshrl.u32 %v100, 7
    %v102 = vsub.s32 0, %v101
    %v103 = vrot.slane %v98, %v102
    %v105 = vadd.f32 %v96, %v103
    %v106 = vadd.f32 %v97, %v103
    %107 = vst.msk [vmem:[%s3] sm:$0xff] %vm90, %v105
    %108 = vst.msk [vmem:[%s3 + $0x8] sm:$0xff] %vm90, %v106
  $region21: #{language_model_forward.12} parent=0 // pred_fallthru
    _
  // Predicated region
  $region22: #{language_model_forward.12} parent=0 // pred_check
    _
  $region23: #{language_model_forward.12} parent=0 // pred_check_branch
    %110 = sbr.rel (0) target = $region25
  $region24: #{language_model_forward.12} parent=0 // pred_region
    _
  $region25: #{language_model_forward.12} parent=0 // pred_fallthru
    _
  // Predicated region
  $region26: #{language_model_forward.12} parent=0 // pred_check
    _
  $region27: #{language_model_forward.12} parent=0 // pred_check_branch
    %112 = sbr.rel (0) target = $region29
  $region28: #{language_model_forward.12} parent=0 // pred_region
    _
  $region29: #{language_model_forward.12} parent=0 // pred_fallthru
    _

// kernel: language_model_forward.14
$region0: #{language_model_forward.14}
  #allocation0 [shape = 'u32[]', space=smem, size = 0x4, offset = 0x4, fixed_abs, tag = 'smem constant byte address 0x4 - core index']
  #allocation1 [shape = 'u32[144,128]{1,0:T(1,128)}', space=vmem, size = 0x12000, scoped, tag = 'internal scratch']
  #allocation2 [shape = 'f32[16,32]{1,0:T(8,128)}', space=vmem, size = 0x2000, scoped, tag = 'scratch operand']
  %s0 = inlined_call_operand.vmem [shape: f32[16,32], index: 0, kind: input, shape index: {}]
  %s1 = inlined_call_operand.vmem [shape: bf16[32,32], index: 1, kind: input, shape index: {}]
  %s2 = inlined_call_operand.vmem [shape: f32[1,32], index: 2, kind: input, shape index: {}]
  %s3 = inlined_call_operand.vmem [shape: f32[16,32], index: 3, kind: input, shape index: {}]
  %s4 = inlined_call_operand.vmem [shape: f32[1,32], index: 4, kind: input, shape index: {}]
  %s5 = inlined_call_operand.vmem [shape: f32[1,32], index: 5, kind: input, shape index: {}]
  %s6 = inlined_call_operand.vmem [shape: f32[16,32], index: 6, kind: output, shape index: {}]
  %s7 = sld [smem:[#allocation0]]
  $region42: #{language_model_forward.14} parent=0
    _
  %s9 = ssub.s32 1, %s7
  %s10 = scalar_select 0, %s9, %s7
  // Predicated region
  $region2: #{language_model_forward.14} parent=0 // pred_check
    _
  $region3: #{language_model_forward.14} parent=0 // pred_check_branch
    %12 = sbr.rel (0) target = $region5
  $region4: #{language_model_forward.14} parent=0 // pred_region
    _
  $region5: #{language_model_forward.14} parent=0 // pred_fallthru
    _
  // Predicated region
  $region6: #{language_model_forward.14} parent=0 // pred_check
    _
  $region7: #{language_model_forward.14} parent=0 // pred_check_branch
    %14 = sbr.rel (0) target = $region9
  $region8: #{language_model_forward.14} parent=0 // pred_region
    _
  $region9: #{language_model_forward.14} parent=0 // pred_fallthru
    _
  // Predicated region
  $region10: #{language_model_forward.14} parent=0 // pred_check
    _
  $region11: #{language_model_forward.14} parent=0 // pred_check_branch
    %16 = sbr.rel (0) target = $region13
  $region12: #{language_model_forward.14} parent=0 // pred_region
    _
  $region13: #{language_model_forward.14} parent=0 // pred_fallthru
    _
  // Predicated region
  $region14: #{language_model_forward.14} parent=0 // pred_check
    _
  $region15: #{language_model_forward.14} parent=0 // pred_check_branch
    %18 = sbr.rel (0) target = $region17
  $region16: #{language_model_forward.14} parent=0 // pred_region
    _
  $region17: #{language_model_forward.14} parent=0 // pred_fallthru
    _
  // Predicated region
  $region18: #{language_model_forward.14} parent=0 // pred_check
    _
  $region19: #{language_model_forward.14} parent=0 // pred_check_branch
    %20 = sbr.rel (0) target = $region21
  $region20: #{language_model_forward.14} parent=0 // pred_region
    _
  $region21: #{language_model_forward.14} parent=0 // pred_fallthru
    _
  // Predicated region
  $region22: #{language_model_forward.14} parent=0 // pred_check
    _
  $region23: #{language_model_forward.14} parent=0 // pred_check_branch
    %22 = sbr.rel (0) target = $region25
  $region24: #{language_model_forward.14} parent=0 // pred_region
    _
  $region25: #{language_model_forward.14} parent=0 // pred_fallthru
    _
  %p24 = scmp.eq.s32.totalorder 0, 0
  // Predicated region
  $region26: #{language_model_forward.14} parent=0 // pred_check
    %p25 = pneg %p24
  $region27: #{language_model_forward.14} parent=0 // pred_check_branch
    %27 = sbr.rel (%p25) target = $region29
  $region28: #{language_model_forward.14} parent=0 // pred_region
    %vm28 = vcmask 261120
    %29 = vst.msk [vmem:[#allocation2] sm:$0xff] %vm28, 0.0
    %30 = vst.msk [vmem:[#allocation2 + $0x8] sm:$0xff] %vm28, 0.0
  $region29: #{language_model_forward.14} parent=0 // pred_fallthru
    _
  %v31 = vld [vmem:[#allocation2] sm:$0xff]
  %v32 = vld [vmem:[#allocation2 + $0x8] sm:$0xff]
  %v33 = vld [vmem:[%s0] sm:$0xff]
  %v34 = vld [vmem:[%s0 + $0x8] sm:$0xff]
  %v35 = vpack.c.bf16 %v34, %v33
  %v36 = vld [vmem:[%s1] sm:$0xf]
  %v37 = vld [vmem:[%s1 + $0x4] sm:$0xf]
  %v38 = vld [vmem:[%s1 + $0x8] sm:$0xf]
  %v39 = vld [vmem:[%s1 + $0xc] sm:$0xf]
  %v44 = vunpack.c.l.b16 %v36
  %v45 = vunpack.c.l.b16 %v37
  %v46 = vunpack.c.l.b16 %v38
  %v47 = vunpack.c.l.b16 %v39
  %v48 = vpack.c.b16 %v45, %v44
  %v49 = vpack.c.b16 %v47, %v46
  %vm52 = vcmask 261120
  %v54 = vsel %vm52, %v35, 0
  %56 = vmatprep.subr.bf16.mxu0 0
  %57 = vmatpush1.bf16.msra.mxu0 %v48
  %58 = vmatprep.subr.bf16.mxu0 0
  %59 = vmatpush1.bf16.msra.mxu0 %v49
  %60 = vmatprep.subr.bf16.mxu0 0
  %61 = vmatpush1.bf16.msra.mxu0 0
  %62 = vmatprep.subr.bf16.mxu0 0
  %63 = vmatpush1.bf16.msra.mxu0 0
  %64 = vmatprep.subr.bf16.mxu0 0
  %65 = vmatpush1.bf16.msra.mxu0 0
  %66 = vmatprep.subr.bf16.mxu0 0
  %67 = vmatpush1.bf16.msra.mxu0 0
  %68 = vmatprep.subr.bf16.mxu0 0
  %69 = vmatpush1.bf16.msra.mxu0 0
  %70 = vmatprep.subr.bf16.mxu0 0
  %71 = vmatpush1.bf16.msra.mxu0 0
  %72 = vmatprep.subr.bf16.mxu0 0
  %73 = vmatpush1.bf16.msra.mxu0 0
  %74 = vmatprep.subr.bf16.mxu0 0
  %75 = vmatpush1.bf16.msra.mxu0 0
  %76 = vmatprep.subr.bf16.mxu0 0
  %77 = vmatpush1.bf16.msra.mxu0 0
  %78 = vmatprep.subr.bf16.mxu0 0
  %79 = vmatpush1.bf16.msra.mxu0 0
  %80 = vmatprep.subr.bf16.mxu0 0
  %81 = vmatpush1.bf16.msra.mxu0 0
  %82 = vmatprep.subr.bf16.mxu0 0
  %83 = vmatpush1.bf16.msra.mxu0 0
  %84 = vmatprep.subr.bf16.mxu0 0
  %85 = vmatpush1.bf16.msra.mxu0 0
  %86 = vmatprep.subr.bf16.mxu0 0
  %87 = vmatpush1.bf16.msra.mxu0 0
  %88 = vmatprep.mubr.bf16.mxu0 0
  %89 = vmatmul.mubr.bf16.gmra.mrb[0].mxu0 %v54
  %v90 = vpop.f32.mrb[0].mxu0
  %v91 = vadd.f32 0.0, %v90
  %v92 = vpop.f32.mrb[0].mxu0
  %v93 = vpop.f32.mrb[0].mxu0
  %v94 = vadd.f32 0.0, %v93
  %v95 = vpop.f32.mrb[0].mxu0
  %96 = vdwg.mxu0
  %v97 = vadd.f32 %v31, %v91
  %v98 = vadd.f32 %v32, %v94
  %99 = vst.msk [vmem:[#allocation2] sm:$0xff] %vm52, %v97
  %100 = vst.msk [vmem:[#allocation2 + $0x8] sm:$0xff] %vm52, %v98
  // Predicated region
  $region30: #{language_model_forward.14} parent=0 // pred_check
    %p101 = pneg %p24
  $region31: #{language_model_forward.14} parent=0 // pred_check_branch
    %103 = sbr.rel (%p101) target = $region33
  $region32: #{language_model_forward.14} parent=0 // pred_region
    %v104 = vld [vmem:[#allocation2] sm:$0xff]
    %v105 = vld [vmem:[#allocation2 + $0x8] sm:$0xff]
    %v106 = vld [vmem:[%s2] sm:$0x1]
    %v108 = vlaneseq
    %v109 = vshrl.u32 %v108, 7
    %v110 = vsub.s32 0, %v109
    %v111 = vrot.slane %v106, %v110
    %v113 = vadd.f32 %v104, %v111
    %v114 = vadd.f32 %v105, %v111
    %v115 = vld [vmem:[%s3] sm:$0xff]
    %v116 = vld [vmem:[%s3 + $0x8] sm:$0xff]
    %v117 = vadd.f32 %v113, %v115
    %v118 = vadd.f32 %v114, %v116
    %v119 = vsel %vm52, %v117, 0.0
    %120 = vadd.xlane.f32.xlu0 %v119
    %v121 = vpop.xlane.xlu0 %120
    %v122 = vsel %vm52, %v118, 0.0
    %123 = vadd.xlane.f32.xlu0 %v122
    %v124 = vpop.xlane.xlu0 %123
    %v125 = vrcp.pop 32.0
    %v126 = vmul.f32 %v121, %v125
    %v127 = vmul.f32 %v124, %v125
    %v128 = vsub.f32 %v117, %v126
    %v129 = vsub.f32 %v118, %v127
    %v130 = vmul.f32 %v128, %v128
    %v131 = vmul.f32 %v129, %v129
    %v132 = vsel %vm52, %v130, 0.0
    %133 = vadd.xlane.f32.xlu0 %v132
    %v134 = vpop.xlane.xlu0 %133
    %v135 = vsel %vm52, %v131, 0.0
    %136 = vadd.xlane.f32.xlu0 %v135
    %v137 = vpop.xlane.xlu0 %136
    %v138 = vmul.f32 %v134, %v125
    %v139 = vmul.f32 %v137, %v125
    %v140 = vadd.f32 %v138, 1e-05
    %v141 = vadd.f32 %v139, 1e-05
    %v142 = vrsqrt.pop %v140
    %v143 = vrsqrt.pop %v141
    %v144 = vmul.f32 %v128, %v142
    %v145 = vmul.f32 %v129, %v143
    %v146 = vld [vmem:[%s4] sm:$0x1]
    %v148 = vlaneseq
    %v149 = vshrl.u32 %v148, 7
    %v150 = vsub.s32 0, %v149
    %v151 = vrot.slane %v146, %v150
    %v153 = vmul.f32 %v144, %v151
    %v154 = vmul.f32 %v145, %v151
    %v155 = vld [vmem:[%s5] sm:$0x1]
    %v157 = vlaneseq
    %v158 = vshrl.u32 %v157, 7
    %v159 = vsub.s32 0, %v158
    %v160 = vrot.slane %v155, %v159
    %v162 = vadd.f32 %v153, %v160
    %v163 = vadd.f32 %v154, %v160
    %164 = vst.msk [vmem:[%s6] sm:$0xff] %vm52, %v162
    %165 = vst.msk [vmem:[%s6 + $0x8] sm:$0xff] %vm52, %v163
  $region33: #{language_model_forward.14} parent=0 // pred_fallthru
    _
  // Predicated region
  $region34: #{language_model_forward.14} parent=0 // pred_check
    _
  $region35: #{language_model_forward.14} parent=0 // pred_check_branch
    %167 = sbr.rel (0) target = $region37
  $region36: #{language_model_forward.14} parent=0 // pred_region
    _
  $region37: #{language_model_forward.14} parent=0 // pred_fallthru
    _
  // Predicated region
  $region38: #{language_model_forward.14} parent=0 // pred_check
    _
  $region39: #{language_model_forward.14} parent=0 // pred_check_branch
    %169 = sbr.rel (0) target = $region41
  $region40: #{language_model_forward.14} parent=0 // pred_region
    _
  $region41: #{language_model_forward.14} parent=0 // pred_fallthru
    _

// kernel: language_model_forward.13
$region0: #{language_model_forward.13}
  #allocation0 [shape = 'u32[]', space=smem, size = 0x4, offset = 0x4, fixed_abs, tag = 'smem constant byte address 0x4 - core index']
  #allocation1 [shape = 'u32[144,128]{1,0:T(1,128)}', space=vmem, size = 0x12000, scoped, tag = 'internal scratch']
  #allocation2 [shape = 'f32[8,1]{1,0:T(8,128)}', space=vmem, size = 0x1000, scoped, tag = 'scratch operand']
  #allocation3 [shape = 'f32[8,1]{1,0:T(8,128)}', space=vmem, size = 0x1000, scoped, tag = 'scratch operand']
  #allocation4 [shape = 'f32[8,8]{1,0:T(8,128)}', space=vmem, size = 0x1000, scoped, tag = 'scratch operand']
  %s0 = inlined_call_operand.vmem [shape: f32[8,8,8], index: 0, kind: input, shape index: {}]
  %s1 = inlined_call_operand.vmem [shape: f32[8,8,8], index: 1, kind: input, shape index: {}]
  %s2 = inlined_call_operand.vmem [shape: f32[8,8,8], index: 2, kind: input, shape index: {}]
  %s3 = inlined_call_operand.vmem [shape: f32[8,8,8], index: 3, kind: output, shape index: {}]
  %s4 = sld [smem:[#allocation0]]
  $region57: #{language_model_forward.13} parent=0
    _
  %s6 = ssub.s32 1, %s4
  %s7 = scalar_select 0, %s6, %s4
  loop: start=0, step=1, limit=10
  $region2: #{language_model_forward.13} parent=0 // loop_pre_header
    _
  $region3: #{language_model_forward.13} parent=0 // loop_header
    %s9 = sphi 0, %s13
    %p10 = scmp.ge.s32.totalorder %s9, 10
    %s16 = sphi 0, %s35
    %s17 = sphi 0, %s31
    %s18 = sphi 0, %s27
    %s19 = sphi 0, %s16
    %s20 = sphi 0, %s17
    %s21 = sphi 0, %s18
    %s22 = sphi 0, %s19
    %s23 = sphi 0, %s20
    %s24 = sphi 0, %s21
    %s40 = sphi 0, %s42
    %s43 = sphi 0, %s40
    %s44 = sphi 0, %s43
    %s60 = sphi 0, %s44
    %s68 = sphi 0, %s70
    %s71 = sphi 0, %s68
    %s72 = sphi 0, %s71
    %s88 = sphi 0, %s72
    %s96 = sphi 0, %s98
    %s99 = sphi 0, %s96
    %s100 = sphi 0, %s99
    %s116 = sphi 0, %s100
    %s124 = sphi 0, %s126
    %s127 = sphi 0, %s124
    %s128 = sphi 0, %s127
    %s144 = sphi 0, %s128
  $region4: #{language_model_forward.13} parent=0 // loop_header_branch
    %12 = sbr.rel (%p10) target = $region8
  $region5: #{language_model_forward.13} parent=0 // loop_body
    %s14 = ssub.s32 %s9, 1
    %s15 = ssub.s32 %s9, 2
    %s25 = sadd.s32 1, %s18
    %p26 = scmp.ge.s32.totalorder %s25, 1
    %s27 = scalar_select %p26, 0, %s25
    %s28 = sadd.s32 1, %s17
    %s29 = scalar_select %p26, %s28, %s17
    %p30 = scmp.ge.s32.totalorder %s29, 1
    %s31 = scalar_select %p30, 0, %s29
    %s32 = sadd.s32 1, %s16
    %s33 = scalar_select %p30, %s32, %s16
    %p34 = scmp.ge.s32.totalorder %s33, 8
    %s35 = scalar_select %p34, 0, %s33
    %s36 = ssub.s32 %s16, %s35
    %s37 = ssub.s32 %s17, %s31
    %s38 = sor.u32 %s36, %s37
    %p39 = scmp.eq.s32.totalorder %s38, 0
    %s41 = sadd.s32 %s40, 1
    %s42 = scalar_select %p39, %s40, %s41
    %p45 = pneg %p39
    %p46 = scmp.eq.s32.totalorder %s9, 7
    %p47 = por %p45, %p46
    %p48 = scmp.ne.s32.totalorder %s40, %s43
    %p49 = scmp.eq.s32.totalorder %s9, 0
    %p50 = por %p48, %p49
    %p51 = scmp.ne.s32.totalorder %s40, %s43
    %p52 = scmp.eq.s32.totalorder %s14, 7
    %p53 = por %p51, %p52
    %p54 = scmp.ne.s32.totalorder %s43, %s44
    %p55 = scmp.eq.s32.totalorder %s14, 0
    %p56 = por %p54, %p55
    %p57 = scmp.ne.s32.totalorder %s43, %s44
    %p58 = scmp.eq.s32.totalorder %s15, 7
    %p59 = por %p57, %p58
    %p61 = scmp.ne.s32.totalorder %s44, %s60
    %p62 = scmp.eq.s32.totalorder %s15, 0
    %p63 = por %p61, %p62
    %s64 = ssub.s32 %s16, %s35
    %s65 = ssub.s32 %s18, %s27
    %s66 = sor.u32 %s64, %s65
    %p67 = scmp.eq.s32.totalorder %s66, 0
    %s69 = sadd.s32 %s68, 1
    %s70 = scalar_select %p67, %s68, %s69
    %p73 = pneg %p67
    %p74 = scmp.eq.s32.totalorder %s9, 7
    %p75 = por %p73, %p74
    %p76 = scmp.ne.s32.totalorder %s68, %s71
    %p77 = scmp.eq.s32.totalorder %s9, 0
    %p78 = por %p76, %p77
    %p79 = scmp.ne.s32.totalorder %s68, %s71
    %p80 = scmp.eq.s32.totalorder %s14, 7
    %p81 = por %p79, %p80
    %p82 = scmp.ne.s32.totalorder %s71, %s72
    %p83 = scmp.eq.s32.totalorder %s14, 0
    %p84 = por %p82, %p83
    %p85 = scmp.ne.s32.totalorder %s71, %s72
    %p86 = scmp.eq.s32.totalorder %s15, 7
    %p87 = por %p85, %p86
    %p89 = scmp.ne.s32.totalorder %s72, %s88
    %p90 = scmp.eq.s32.totalorder %s15, 0
    %p91 = por %p89, %p90
    %s92 = ssub.s32 %s16, %s35
    %s93 = ssub.s32 %s18, %s27
    %s94 = sor.u32 %s92, %s93
    %p95 = scmp.eq.s32.totalorder %s94, 0
    %s97 = sadd.s32 %s96, 1
    %s98 = scalar_select %p95, %s96, %s97
    %p101 = pneg %p95
    %p102 = scmp.eq.s32.totalorder %s9, 7
    %p103 = por %p101, %p102
    %p104 = scmp.ne.s32.totalorder %s96, %s99
    %p105 = scmp.eq.s32.totalorder %s9, 0
    %p106 = por %p104, %p105
    %p107 = scmp.ne.s32.totalorder %s96, %s99
    %p108 = scmp.eq.s32.totalorder %s14, 7
    %p109 = por %p107, %p108
    %p110 = scmp.ne.s32.totalorder %s99, %s100
    %p111 = scmp.eq.s32.totalorder %s14, 0
    %p112 = por %p110, %p111
    %p113 = scmp.ne.s32.totalorder %s99, %s100
    %p114 = scmp.eq.s32.totalorder %s15, 7
    %p115 = por %p113, %p114
    %p117 = scmp.ne.s32.totalorder %s100, %s116
    %p118 = scmp.eq.s32.totalorder %s15, 0
    %p119 = por %p117, %p118
    %s120 = ssub.s32 %s16, %s35
    %s121 = ssub.s32 %s17, %s31
    %s122 = sor.u32 %s120, %s121
    %p123 = scmp.eq.s32.totalorder %s122, 0
    %s125 = sadd.s32 %s124, 1
    %s126 = scalar_select %p123, %s124, %s125
    %p129 = pneg %p123
    %p130 = scmp.eq.s32.totalorder %s9, 7
    %p131 = por %p129, %p130
    %p132 = scmp.ne.s32.totalorder %s124, %s127
    %p133 = scmp.eq.s32.totalorder %s9, 0
    %p134 = por %p132, %p133
    %p135 = scmp.ne.s32.totalorder %s124, %s127
    %p136 = scmp.eq.s32.totalorder %s14, 7
    %p137 = por %p135, %p136
    %p138 = scmp.ne.s32.totalorder %s127, %s128
    %p139 = scmp.eq.s32.totalorder %s14, 0
    %p140 = por %p138, %p139
    %p141 = scmp.ne.s32.totalorder %s127, %s128
    %p142 = scmp.eq.s32.totalorder %s15, 7
    %p143 = por %p141, %p142
    %p145 = scmp.ne.s32.totalorder %s128, %s144
    %p146 = scmp.eq.s32.totalorder %s15, 0
    %p147 = por %p145, %p146
    %p148 = scmp.le.s32.totalorder 1, %s9
    %p149 = scmp.lt.s32.totalorder %s9, 9
    %p150 = pnand %p148, %p149
    %p151 = pneg %p150
    // Predicated region
    $region9: #{language_model_forward.13} parent=5 // pred_check
      _
    $region10: #{language_model_forward.13} parent=5 // pred_check_branch
      %153 = sbr.rel (%p150) target = $region12
    $region11: #{language_model_forward.13} parent=5 // pred_region
      %s154 = ssub.s32 %s9, 1
    $region12: #{language_model_forward.13} parent=5 // pred_fallthru
      _
    %p155 = scmp.lt.s32.totalorder %s9, 8
    // Predicated region
    $region13: #{language_model_forward.13} parent=5 // pred_check
      %p156 = pneg %p155
    $region14: #{language_model_forward.13} parent=5 // pred_check_branch
      %158 = sbr.rel (%p156) target = $region16
    $region15: #{language_model_forward.13} parent=5 // pred_region
      // Predicated region
      $region17: #{language_model_forward.13} parent=15 // pred_check
        %p159 = pneg %p50
      $region18: #{language_model_forward.13} parent=15 // pred_check_branch
        %161 = sbr.rel (%p159) target = $region20
      $region19: #{language_model_forward.13} parent=15 // pred_region
        %p162 = scmp.lt.s32.totalorder %s16, 7
        %s163 = scalar_select %p162, %s16, 7
        %p164 = scmp.lt.s32.totalorder %s17, 0
        %s165 = scalar_select %p164, %s17, 0
        %s166 = sadd.s32 %s165, %s163
        %s167 = smul.addr %s166, 8
        %s168 = scalar_lea.vmem %s0, %s167
      $region20: #{language_model_forward.13} parent=15 // pred_fallthru
        _
      // Predicated region
      $region21: #{language_model_forward.13} parent=15 // pred_check
        %p169 = pneg %p78
      $region22: #{language_model_forward.13} parent=15 // pred_check_branch
        %171 = sbr.rel (%p169) target = $region24
      $region23: #{language_model_forward.13} parent=15 // pred_region
        %p172 = scmp.lt.s32.totalorder %s16, 7
        %s173 = scalar_select %p172, %s16, 7
        %p174 = scmp.lt.s32.totalorder %s18, 0
        %s175 = scalar_select %p174, %s18, 0
        %s176 = sadd.s32 %s175, %s173
        %s177 = smul.addr %s176, 8
        %s178 = scalar_lea.vmem %s1, %s177
      $region24: #{language_model_forward.13} parent=15 // pred_fallthru
        _
      // Predicated region
      $region25: #{language_model_forward.13} parent=15 // pred_check
        %p179 = pneg %p106
      $region26: #{language_model_forward.13} parent=15 // pred_check_branch
        %181 = sbr.rel (%p179) target = $region28
      $region27: #{language_model_forward.13} parent=15 // pred_region
        %p182 = scmp.lt.s32.totalorder %s16, 7
        %s183 = scalar_select %p182, %s16, 7
        %p184 = scmp.lt.s32.totalorder %s18, 0
        %s185 = scalar_select %p184, %s18, 0
        %s186 = sadd.s32 %s185, %s183
        %s187 = smul.addr %s186, 8
        %s188 = scalar_lea.vmem %s2, %s187
      $region28: #{language_model_forward.13} parent=15 // pred_fallthru
        _
    $region16: #{language_model_forward.13} parent=5 // pred_fallthru
      _
    %p189 = scmp.le.s32.totalorder 1, %s9
    %p190 = scmp.lt.s32.totalorder %s9, 9
    %p191 = pnand %p189, %p190
    %p192 = pneg %p191
    // Predicated region
    $region29: #{language_model_forward.13} parent=5 // pred_check
      _
    $region30: #{language_model_forward.13} parent=5 // pred_check_branch
      %194 = sbr.rel (%p191) target = $region32
    $region31: #{language_model_forward.13} parent=5 // pred_region
      %s195 = ssub.s32 %s9, 1
      %p196 = scmp.lt.s32.totalorder %s19, 7
      %s197 = scalar_select %p196, %s19, 7
      %p198 = scmp.lt.s32.totalorder %s20, 0
      %s199 = scalar_select %p198, %s20, 0
      %s200 = sadd.s32 %s199, %s197
      %s201 = smul.addr %s200, 8
      %s202 = scalar_lea.vmem %s0, %s201
      %p203 = pneg %p56
      %p204 = pneg %p53
      %p205 = scmp.lt.s32.totalorder %s19, 7
      %s206 = scalar_select %p205, %s19, 7
      %p207 = scmp.lt.s32.totalorder %s21, 0
      %s208 = scalar_select %p207, %s21, 0
      %s209 = sadd.s32 %s208, %s206
      %s210 = smul.addr %s209, 8
      %s211 = scalar_lea.vmem %s1, %s210
      %p212 = pneg %p84
      %p213 = pneg %p81
      %p214 = scmp.lt.s32.totalorder %s19, 7
      %s215 = scalar_select %p214, %s19, 7
      %p216 = scmp.lt.s32.totalorder %s21, 0
      %s217 = scalar_select %p216, %s21, 0
      %s218 = sadd.s32 %s217, %s215
      %s219 = smul.addr %s218, 8
      %s220 = scalar_lea.vmem %s2, %s219
      %p221 = pneg %p112
      %p222 = pneg %p109
      %p223 = pneg %p140
      %p224 = pneg %p137
      %p225 = scmp.lt.s32.totalorder %s19, 7
      %s226 = scalar_select %p225, %s19, 7
      %p227 = scmp.lt.s32.totalorder %s20, 0
      %s228 = scalar_select %p227, %s20, 0
      %s229 = sadd.s32 %s228, %s226
      %s230 = smul.addr %s229, 8
      %s231 = scalar_lea.vmem %s3, %s230
      %p232 = scmp.lt.s32.totalorder %s19, 7
      %s233 = scalar_select %p232, %s19, 7
      %p234 = scmp.lt.s32.totalorder %s20, 0
      %s235 = scalar_select %p234, %s20, 0
      %s236 = sadd.s32 %s235, %s233
      %s237 = smul.addr %s236, 8
      %s238 = scalar_lea.vmem %s0, %s237
      %p239 = scmp.lt.s32.totalorder %s19, 7
      %s240 = scalar_select %p239, %s19, 7
      %p241 = scmp.lt.s32.totalorder %s21, 0
      %s242 = scalar_select %p241, %s21, 0
      %s243 = sadd.s32 %s242, %s240
      %s244 = smul.addr %s243, 8
      %s245 = scalar_lea.vmem %s1, %s244
      %p246 = scmp.lt.s32.totalorder %s19, 7
      %s247 = scalar_select %p246, %s19, 7
      %p248 = scmp.lt.s32.totalorder %s21, 0
      %s249 = scalar_select %p248, %s21, 0
      %s250 = sadd.s32 %s249, %s247
      %s251 = smul.addr %s250, 8
      %s252 = scalar_lea.vmem %s2, %s251
      %p253 = scmp.lt.s32.totalorder %s19, 7
      %s254 = scalar_select %p253, %s19, 7
      %p255 = scmp.lt.s32.totalorder %s20, 0
      %s256 = scalar_select %p255, %s20, 0
      %s257 = sadd.s32 %s256, %s254
      %s258 = smul.addr %s257, 8
      %s259 = scalar_lea.vmem %s3, %s258
      %p261 = scmp.eq.s32.totalorder %s21, 0
      // Predicated region
      $region33: #{language_model_forward.13} parent=31 // pred_check
        %p262 = pneg %p261
      $region34: #{language_model_forward.13} parent=31 // pred_check_branch
        %264 = sbr.rel (%p262) target = $region36
      $region35: #{language_model_forward.13} parent=31 // pred_region
        %vm265 = vcmask 7168
        %266 = vst.msk [vmem:[#allocation2] sm:$0xff] %vm265, -inf
        %267 = vst.msk [vmem:[#allocation3] sm:$0xff] %vm265, 0.0
        %vm268 = vcmask 64512
        %269 = vst.msk [vmem:[#allocation4] sm:$0xff] %vm268, 0.0
      $region36: #{language_model_forward.13} parent=31 // pred_fallthru
        _
      %s270 = smul.u32 %s21, 8
      %s271 = smul.u32 %s20, 8
      %s272 = sadd.s32 %s271, 7
      %p273 = scmp.le.s32.totalorder %s270, %s272
      // Predicated region
      $region37: #{language_model_forward.13} parent=31 // pred_check
        %p274 = pneg %p273
      $region38: #{language_model_forward.13} parent=31 // pred_check_branch
        %276 = sbr.rel (%p274) target = $region40
      $region39: #{language_model_forward.13} parent=31 // pred_region
        %v277 = vld [vmem:[%s238] sm:$0xff]
        %v278 = vpack.c.bf16 %v277, %v277
        %v279 = vld [vmem:[%s245] sm:$0xff]
        %v280 = vpack.c.bf16 %v279, %v279
        %v281 = vld [vmem:[%s252] sm:$0xff]
        %v282 = vpack.c.bf16 %v281, %v281
        %vm283 = vcmask 64512
        %v285 = vsel %vm283, %v278, 0
        %v288 = vsel %vm283, %v280, 0
        %290 = vmatprep.subr.bf16.mxu0 0
        %291 = vmatpush1.bf16.xpose.msra.mxu0 %v288
        %292 = vmatprep.subr.bf16.mxu0 0
        %293 = vmatpush1.bf16.xpose.msra.mxu0 0
        %294 = vmatprep.subr.bf16.mxu0 0
        %295 = vmatpush1.bf16.xpose.msra.mxu0 0
        %296 = vmatprep.subr.bf16.mxu0 0
        %297 = vmatpush1.bf16.xpose.msra.mxu0 0
        %298 = vmatprep.subr.bf16.mxu0 0
        %299 = vmatpush1.bf16.xpose.msra.mxu0 0
        %300 = vmatprep.subr.bf16.mxu0 0
        %301 = vmatpush1.bf16.xpose.msra.mxu0 0
        %302 = vmatprep.subr.bf16.mxu0 0
        %303 = vmatpush1.bf16.xpose.msra.mxu0 0
        %304 = vmatprep.subr.bf16.mxu0 0
        %305 = vmatpush1.bf16.xpose.msra.mxu0 0
        %306 = vmatprep.subr.bf16.mxu0 0
        %307 = vmatpush1.bf16.xpose.msra.mxu0 0
        %308 = vmatprep.subr.bf16.mxu0 0
        %309 = vmatpush1.bf16.xpose.msra.mxu0 0
        %310 = vmatprep.subr.bf16.mxu0 0
        %311 = vmatpush1.bf16.xpose.msra.mxu0 0
        %312 = vmatprep.subr.bf16.mxu0 0
        %313 = vmatpush1.bf16.xpose.msra.mxu0 0
        %314 = vmatprep.subr.bf16.mxu0 0
        %315 = vmatpush1.bf16.xpose.msra.mxu0 0
        %316 = vmatprep.subr.bf16.mxu0 0
        %317 = vmatpush1.bf16.xpose.msra.mxu0 0
        %318 = vmatprep.subr.bf16.mxu0 0
        %319 = vmatpush1.bf16.xpose.msra.mxu0 0
        %320 = vmatprep.subr.bf16.mxu0 0
        %321 = vmatpush1.bf16.xpose.msra.mxu0 0
        %322 = vmatprep.mubr.bf16.mxu0 0
        %323 = vmatmul.mubr.bf16.gmra.mrb[0].mxu0 %v285
        %v324 = vpop.f32.mrb[0].mxu0
        %v325 = vadd.f32 0.0, %v324
        %v326 = vpop.f32.mrb[0].mxu0
        %v327 = vpop.f32.mrb[0].mxu0
        %v328 = vpop.f32.mrb[0].mxu0
        %329 = vdwg.mxu0
        %v330 = vmul.f32 %v325, 0.35355338
        %v331 = vlaneseq
        %v332 = vshrl.u32 %v331, 7
        %v333 = vstv %s271
        %v334 = vadd.s32 %v333, %v332
        %v335 = vlaneseq
        %v336 = vand.u32 %v335, 127
        %v337 = vstv %s270
        %v338 = vadd.s32 %v337, %v336
        %vm339 = vcmp.le.s32.totalorder %v338, %v334
        %v340 = vsel %vm339, %v330, -1e+30
        %v341 = vld [vmem:[#allocation2] sm:$0xff]
        %v342 = vsel %vm283, %v340, -inf
        %343 = vmax.xlane.f32.xlu0 %v342
        %v344 = vpop.xlane.xlu0 %343
        %v345 = vmax.f32 %v341, %v344
        %v346 = vsub.f32 %v341, %v345
        %v347 = vmul.f32 %v346, 1.442695
        %v348 = vpow.pop %v347
        %350 = vset.pattern.permute.xlu0 0
        %351 = vperm.xlu0 %350, %v345
        %v352 = vpop.permute.xlu0 %351
        %v354 = vsub.f32 %v340, %v352
        %v355 = vmul.f32 %v354, 1.442695
        %v356 = vpow.pop %v355
        %v357 = vld [vmem:[#allocation3] sm:$0xff]
        %v358 = vmul.f32 %v348, %v357
        %v359 = vsel %vm283, %v356, 0.0
        %360 = vadd.xlane.f32.xlu0 %v359
        %v361 = vpop.xlane.xlu0 %360
        %v362 = vadd.f32 %v358, %v361
        %vm363 = vcmask 7168
        %364 = vst.msk [vmem:[#allocation3] sm:$0xff] %vm363, %v362
        %v365 = vld [vmem:[#allocation4] sm:$0xff]
        %367 = vset.pattern.permute.xlu0 0
        %368 = vperm.xlu0 %367, %v348
        %v369 = vpop.permute.xlu0 %368
        %v371 = vmul.f32 %v369, %v365
        %v372 = vpack.c.bf16 %v356, %v356
        %v374 = vsel %vm283, %v372, 0
        %vm376 = vcmask 1043456
        %v378 = vsel %vm376, %v282, 0
        %380 = vmatprep.subr.bf16.mxu0 0
        %381 = vmatpush1.bf16.msra.mxu0 %v378
        %382 = vmatprep.subr.bf16.mxu0 0
        %383 = vmatpush1.bf16.msra.mxu0 0
        %384 = vmatprep.subr.bf16.mxu0 0
        %385 = vmatpush1.bf16.msra.mxu0 0
        %386 = vmatprep.subr.bf16.mxu0 0
        %387 = vmatpush1.bf16.msra.mxu0 0
        %388 = vmatprep.subr.bf16.mxu0 0
        %389 = vmatpush1.bf16.msra.mxu0 0
        %390 = vmatprep.subr.bf16.mxu0 0
        %391 = vmatpush1.bf16.msra.mxu0 0
        %392 = vmatprep.subr.bf16.mxu0 0
        %393 = vmatpush1.bf16.msra.mxu0 0
        %394 = vmatprep.subr.bf16.mxu0 0
        %395 = vmatpush1.bf16.msra.mxu0 0
        %396 = vmatprep.subr.bf16.mxu0 0
        %397 = vmatpush1.bf16.msra.mxu0 0
        %398 = vmatprep.subr.bf16.mxu0 0
        %399 = vmatpush1.bf16.msra.mxu0 0
        %400 = vmatprep.subr.bf16.mxu0 0
        %401 = vmatpush1.bf16.msra.mxu0 0
        %402 = vmatprep.subr.bf16.mxu0 0
        %403 = vmatpush1.bf16.msra.mxu0 0
        %404 = vmatprep.subr.bf16.mxu0 0
        %405 = vmatpush1.bf16.msra.mxu0 0
        %406 = vmatprep.subr.bf16.mxu0 0
        %407 = vmatpush1.bf16.msra.mxu0 0
        %408 = vmatprep.subr.bf16.mxu0 0
        %409 = vmatpush1.bf16.msra.mxu0 0
        %410 = vmatprep.subr.bf16.mxu0 0
        %411 = vmatpush1.bf16.msra.mxu0 0
        %412 = vmatprep.mubr.bf16.mxu0 0
        %413 = vmatmul.mubr.bf16.gmra.mrb[0].mxu0 %v374
        %v414 = vpop.f32.mrb[0].mxu0
        %v415 = vadd.f32 0.0, %v414
        %v416 = vpop.f32.mrb[0].mxu0
        %v417 = vpop.f32.mrb[0].mxu0
        %v418 = vpop.f32.mrb[0].mxu0
        %419 = vdwg.mxu0
        %v420 = vadd.f32 %v371, %v415
        %421 = vst.msk [vmem:[#allocation4] sm:$0xff] %vm283, %v420
        %422 = vst.msk [vmem:[#allocation2] sm:$0xff] %vm363, %v345
      $region40: #{language_model_forward.13} parent=31 // pred_fallthru
        _
      // Predicated region
      $region41: #{language_model_forward.13} parent=31 // pred_check
        %p423 = pneg %p261
      $region42: #{language_model_forward.13} parent=31 // pred_check_branch
        %425 = sbr.rel (%p423) target = $region44
      $region43: #{language_model_forward.13} parent=31 // pred_region
        %v426 = vld [vmem:[#allocation4] sm:$0xff]
        %v427 = vld [vmem:[#allocation3] sm:$0xff]
        %v428 = vrcp.pop %v427
        %430 = vset.pattern.permute.xlu0 0
        %431 = vperm.xlu0 %430, %v428
        %v432 = vpop.permute.xlu0 %431
        %v434 = vmul.f32 %v426, %v432
        %vm435 = vcmask 64512
        %436 = vst.msk [vmem:[%s259] sm:$0xff] %vm435, %v434
      $region44: #{language_model_forward.13} parent=31 // pred_fallthru
        _
      %p437 = scmp.lt.s32.totalorder %s19, 7
      %s438 = scalar_select %p437, %s19, 7
      %p439 = scmp.lt.s32.totalorder %s20, 0
      %s440 = scalar_select %p439, %s20, 0
      %s441 = sadd.s32 %s440, %s438
      %s442 = smul.addr %s441, 8
      %s443 = scalar_lea.vmem %s3, %s442
      // Predicated region
      $region45: #{language_model_forward.13} parent=31 // pred_check
        %p444 = pneg %p137
      $region46: #{language_model_forward.13} parent=31 // pred_check_branch
        %446 = sbr.rel (%p444) target = $region48
      $region47: #{language_model_forward.13} parent=31 // pred_region
        _
      $region48: #{language_model_forward.13} parent=31 // pred_fallthru
        _
    $region32: #{language_model_forward.13} parent=5 // pred_fallthru
      _
    %p447 = scmp.le.s32.totalorder 2, %s9
    // Predicated region
    $region49: #{language_model_forward.13} parent=5 // pred_check
      %p448 = pneg %p447
    $region50: #{language_model_forward.13} parent=5 // pred_check_branch
      %450 = sbr.rel (%p448) target = $region52
    $region51: #{language_model_forward.13} parent=5 // pred_region
      %s451 = ssub.s32 %s9, 2
      // Predicated region
      $region53: #{language_model_forward.13} parent=51 // pred_check
        %p452 = pneg %p143
      $region54: #{language_model_forward.13} parent=51 // pred_check_branch
        %454 = sbr.rel (%p452) target = $region56
      $region55: #{language_model_forward.13} parent=51 // pred_region
        %p455 = scmp.lt.s32.totalorder %s22, 7
        %s456 = scalar_select %p455, %s22, 7
        %p457 = scmp.lt.s32.totalorder %s23, 0
        %s458 = scalar_select %p457, %s23, 0
        %s459 = sadd.s32 %s458, %s456
        %s460 = smul.addr %s459, 8
        %s461 = scalar_lea.vmem %s3, %s460
      $region56: #{language_model_forward.13} parent=51 // pred_fallthru
        _
    $region52: #{language_model_forward.13} parent=5 // pred_fallthru
      _
  $region6: #{language_model_forward.13} parent=0 // loop_footer
    %s13 = sadd.s32 1, %s9
  $region7: #{language_model_forward.13} parent=0 // loop_footer_branch
    %8 = sbr.rel target = $region3
  $region8: #{language_model_forward.13} parent=0 // loop_exit
    _

// kernel: language_model_forward.15
$region0: #{language_model_forward.15}
  #allocation0 [shape = 'u32[]', space=smem, size = 0x4, offset = 0x4, fixed_abs, tag = 'smem constant byte address 0x4 - core index']
  #allocation1 [shape = 'u32[144,128]{1,0:T(1,128)}', space=vmem, size = 0x12000, scoped, tag = 'internal scratch']
  #allocation2 [shape = 'f32[16,64]{1,0:T(8,128)}', space=vmem, size = 0x2000, scoped, tag = 'scratch operand']
  %s0 = inlined_call_operand.vmem [shape: f32[16,32], index: 0, kind: input, shape index: {}]
  %s1 = inlined_call_operand.vmem [shape: bf16[32,64], index: 1, kind: input, shape index: {}]
  %s2 = inlined_call_operand.vmem [shape: f32[1,64], index: 2, kind: input, shape index: {}]
  %s3 = inlined_call_operand.vmem [shape: f32[16,64], index: 3, kind: output, shape index: {}]
  %s4 = sld [smem:[#allocation0]]
  $region30: #{language_model_forward.15} parent=0
    _
  %s6 = ssub.s32 1, %s4
  %s7 = scalar_select 0, %s6, %s4
  // Predicated region
  $region2: #{language_model_forward.15} parent=0 // pred_check
    _
  $region3: #{language_model_forward.15} parent=0 // pred_check_branch
    %9 = sbr.rel (0) target = $region5
  $region4: #{language_model_forward.15} parent=0 // pred_region
    _
  $region5: #{language_model_forward.15} parent=0 // pred_fallthru
    _
  // Predicated region
  $region6: #{language_model_forward.15} parent=0 // pred_check
    _
  $region7: #{language_model_forward.15} parent=0 // pred_check_branch
    %11 = sbr.rel (0) target = $region9
  $region8: #{language_model_forward.15} parent=0 // pred_region
    _
  $region9: #{language_model_forward.15} parent=0 // pred_fallthru
    _
  // Predicated region
  $region10: #{language_model_forward.15} parent=0 // pred_check
    _
  $region11: #{language_model_forward.15} parent=0 // pred_check_branch
    %13 = sbr.rel (0) target = $region13
  $region12: #{language_model_forward.15} parent=0 // pred_region
    _
  $region13: #{language_model_forward.15} parent=0 // pred_fallthru
    _
  %p15 = scmp.eq.s32.totalorder 0, 0
  // Predicated region
  $region14: #{language_model_forward.15} parent=0 // pred_check
    %p16 = pneg %p15
  $region15: #{language_model_forward.15} parent=0 // pred_check_branch
    %18 = sbr.rel (%p16) target = $region17
  $region16: #{language_model_forward.15} parent=0 // pred_region
    %vm19 = vcmask 523264
    %20 = vst.msk [vmem:[#allocation2] sm:$0xff] %vm19, 0.0
    %21 = vst.msk [vmem:[#allocation2 + $0x8] sm:$0xff] %vm19, 0.0
  $region17: #{language_model_forward.15} parent=0 // pred_fallthru
    _
  %v22 = vld [vmem:[#allocation2] sm:$0xff]
  %v23 = vld [vmem:[#allocation2 + $0x8] sm:$0xff]
  %v24 = vld [vmem:[%s0] sm:$0xff]
  %v25 = vld [vmem:[%s0 + $0x8] sm:$0xff]
  %v26 = vpack.c.bf16 %v25, %v24
  %v27 = vld [vmem:[%s1] sm:$0xf]
  %v28 = vld [vmem:[%s1 + $0x4] sm:$0xf]
  %v29 = vld [vmem:[%s1 + $0x8] sm:$0xf]
  %v30 = vld [vmem:[%s1 + $0xc] sm:$0xf]
  %v35 = vunpack.c.l.b16 %v27
  %v36 = vunpack.c.l.b16 %v28
  %v37 = vunpack.c.l.b16 %v29
  %v38 = vunpack.c.l.b16 %v30
  %v39 = vpack.c.b16 %v36, %v35
  %v40 = vpack.c.b16 %v38, %v37
  %vm43 = vcmask 261120
  %v45 = vsel %vm43, %v26, 0
  %47 = vmatprep.subr.bf16.mxu0 0
  %48 = vmatpush1.bf16.msra.mxu0 %v39
  %49 = vmatprep.subr.bf16.mxu0 0
  %50 = vmatpush1.bf16.msra.mxu0 %v40
  %51 = vmatprep.subr.bf16.mxu0 0
  %52 = vmatpush1.bf16.msra.mxu0 0
  %53 = vmatprep.subr.bf16.mxu0 0
  %54 = vmatpush1.bf16.msra.mxu0 0
  %55 = vmatprep.subr.bf16.mxu0 0
  %56 = vmatpush1.bf16.msra.mxu0 0
  %57 = vmatprep.subr.bf16.mxu0 0
  %58 = vmatpush1.bf16.msra.mxu0 0
  %59 = vmatprep.subr.bf16.mxu0 0
  %60 = vmatpush1.bf16.msra.mxu0 0
  %61 = vmatprep.subr.bf16.mxu0 0
  %62 = vmatpush1.bf16.msra.mxu0 0
  %63 = vmatprep.subr.bf16.mxu0 0
  %64 = vmatpush1.bf16.msra.mxu0 0
  %65 = vmatprep.subr.bf16.mxu0 0
  %66 = vmatpush1.bf16.msra.mxu0 0
  %67 = vmatprep.subr.bf16.mxu0 0
  %68 = vmatpush1.bf16.msra.mxu0 0
  %69 = vmatprep.subr.bf16.mxu0 0
  %70 = vmatpush1.bf16.msra.mxu0 0
  %71 = vmatprep.subr.bf16.mxu0 0
  %72 = vmatpush1.bf16.msra.mxu0 0
  %73 = vmatprep.subr.bf16.mxu0 0
  %74 = vmatpush1.bf16.msra.mxu0 0
  %75 = vmatprep.subr.bf16.mxu0 0
  %76 = vmatpush1.bf16.msra.mxu0 0
  %77 = vmatprep.subr.bf16.mxu0 0
  %78 = vmatpush1.bf16.msra.mxu0 0
  %79 = vmatprep.mubr.bf16.mxu0 0
  %80 = vmatmul.mubr.bf16.gmra.mrb[0].mxu0 %v45
  %v81 = vpop.f32.mrb[0].mxu0
  %v82 = vadd.f32 0.0, %v81
  %v83 = vpop.f32.mrb[0].mxu0
  %v84 = vpop.f32.mrb[0].mxu0
  %v85 = vadd.f32 0.0, %v84
  %v86 = vpop.f32.mrb[0].mxu0
  %87 = vdwg.mxu0
  %v88 = vadd.f32 %v22, %v82
  %v89 = vadd.f32 %v23, %v85
  %vm90 = vcmask 523264
  %91 = vst.msk [vmem:[#allocation2] sm:$0xff] %vm90, %v88
  %92 = vst.msk [vmem:[#allocation2 + $0x8] sm:$0xff] %vm90, %v89
  // Predicated region
  $region18: #{language_model_forward.15} parent=0 // pred_check
    %p93 = pneg %p15
  $region19: #{language_model_forward.15} parent=0 // pred_check_branch
    %95 = sbr.rel (%p93) target = $region21
  $region20: #{language_model_forward.15} parent=0 // pred_region
    %v96 = vld [vmem:[#allocation2] sm:$0xff]
    %v97 = vld [vmem:[#allocation2 + $0x8] sm:$0xff]
    %v98 = vld [vmem:[%s2] sm:$0x1]
    %v100 = vlaneseq
    %v101 = vshrl.u32 %v100, 7
    %v102 = vsub.s32 0, %v101
    %v103 = vrot.slane %v98, %v102
    %v105 = vadd.f32 %v96, %v103
    %v106 = vadd.f32 %v97, %v103
    %v107 = vmax.f32 %v105, 0.0
    %v108 = vmax.f32 %v106, 0.0
    %109 = vst.msk [vmem:[%s3] sm:$0xff] %vm90, %v107
    %110 = vst.msk [vmem:[%s3 + $0x8] sm:$0xff] %vm90, %v108
  $region21: #{language_model_forward.15} parent=0 // pred_fallthru
    _
  // Predicated region
  $region22: #{language_model_forward.15} parent=0 // pred_check
    _
  $region23: #{language_model_forward.15} parent=0 // pred_check_branch
    %112 = sbr.rel (0) target = $region25
  $region24: #{language_model_forward.15} parent=0 // pred_region
    _
  $region25: #{language_model_forward.15} parent=0 // pred_fallthru
    _
  // Predicated region
  $region26: #{language_model_forward.15} parent=0 // pred_check
    _
  $region27: #{language_model_forward.15} parent=0 // pred_check_branch
    %114 = sbr.rel (0) target = $region29
  $region28: #{language_model_forward.15} parent=0 // pred_region
    _
  $region29: #{language_model_forward.15} parent=0 // pred_fallthru
    _

// kernel: language_model_forward.22
$region0: #{language_model_forward.22}
  #allocation0 [shape = 'u32[]', space=smem, size = 0x4, offset = 0x4, fixed_abs, tag = 'smem constant byte address 0x4 - core index']
  #allocation1 [shape = 'u32[144,128]{1,0:T(1,128)}', space=vmem, size = 0x12000, scoped, tag = 'internal scratch']
  %s0 = inlined_call_operand.vmem [shape: f32[16,32], index: 0, kind: input, shape index: {}]
  %s1 = inlined_call_operand.vmem [shape: f32[1,32], index: 1, kind: input, shape index: {}]
  %s2 = inlined_call_operand.vmem [shape: f32[1,32], index: 2, kind: input, shape index: {}]
  %s3 = inlined_call_operand.vmem [shape: f32[16,32], index: 3, kind: output, shape index: {}]
  %s4 = sld [smem:[#allocation0]]
  $region22: #{language_model_forward.22} parent=0
    _
  %s6 = ssub.s32 1, %s4
  %s7 = scalar_select 0, %s6, %s4
  // Predicated region
  $region2: #{language_model_forward.22} parent=0 // pred_check
    _
  $region3: #{language_model_forward.22} parent=0 // pred_check_branch
    %9 = sbr.rel (0) target = $region5
  $region4: #{language_model_forward.22} parent=0 // pred_region
    _
  $region5: #{language_model_forward.22} parent=0 // pred_fallthru
    _
  // Predicated region
  $region6: #{language_model_forward.22} parent=0 // pred_check
    _
  $region7: #{language_model_forward.22} parent=0 // pred_check_branch
    %11 = sbr.rel (0) target = $region9
  $region8: #{language_model_forward.22} parent=0 // pred_region
    _
  $region9: #{language_model_forward.22} parent=0 // pred_fallthru
    _
  // Predicated region
  $region10: #{language_model_forward.22} parent=0 // pred_check
    _
  $region11: #{language_model_forward.22} parent=0 // pred_check_branch
    %13 = sbr.rel (0) target = $region13
  $region12: #{language_model_forward.22} parent=0 // pred_region
    _
  $region13: #{language_model_forward.22} parent=0 // pred_fallthru
    _
  %v14 = vld [vmem:[%s0] sm:$0xff]
  %v15 = vld [vmem:[%s0 + $0x8] sm:$0xff]
  %vm16 = vcmask 261120
  %v17 = vsel %vm16, %v14, 0.0
  %18 = vadd.xlane.f32.xlu0 %v17
  %v19 = vpop.xlane.xlu0 %18
  %v20 = vsel %vm16, %v15, 0.0
  %21 = vadd.xlane.f32.xlu0 %v20
  %v22 = vpop.xlane.xlu0 %21
  %v23 = vrcp.pop 32.0
  %v24 = vmul.f32 %v19, %v23
  %v25 = vmul.f32 %v22, %v23
  %v26 = vsub.f32 %v14, %v24
  %v27 = vsub.f32 %v15, %v25
  %v28 = vmul.f32 %v26, %v26
  %v29 = vmul.f32 %v27, %v27
  %v30 = vsel %vm16, %v28, 0.0
  %31 = vadd.xlane.f32.xlu0 %v30
  %v32 = vpop.xlane.xlu0 %31
  %v33 = vsel %vm16, %v29, 0.0
  %34 = vadd.xlane.f32.xlu0 %v33
  %v35 = vpop.xlane.xlu0 %34
  %v36 = vmul.f32 %v32, %v23
  %v37 = vmul.f32 %v35, %v23
  %v38 = vadd.f32 %v36, 1e-05
  %v39 = vadd.f32 %v37, 1e-05
  %v40 = vrsqrt.pop %v38
  %v41 = vrsqrt.pop %v39
  %v42 = vmul.f32 %v26, %v40
  %v43 = vmul.f32 %v27, %v41
  %v44 = vld [vmem:[%s1] sm:$0x1]
  %v46 = vlaneseq
  %v47 = vshrl.u32 %v46, 7
  %v48 = vsub.s32 0, %v47
  %v49 = vrot.slane %v44, %v48
  %v51 = vmul.f32 %v42, %v49
  %v52 = vmul.f32 %v43, %v49
  %v53 = vld [vmem:[%s2] sm:$0x1]
  %v55 = vlaneseq
  %v56 = vshrl.u32 %v55, 7
  %v57 = vsub.s32 0, %v56
  %v58 = vrot.slane %v53, %v57
  %v60 = vadd.f32 %v51, %v58
  %v61 = vadd.f32 %v52, %v58
  %62 = vst.msk [vmem:[%s3] sm:$0xff] %vm16, %v60
  %63 = vst.msk [vmem:[%s3 + $0x8] sm:$0xff] %vm16, %v61
  // Predicated region
  $region14: #{language_model_forward.22} parent=0 // pred_check
    _
  $region15: #{language_model_forward.22} parent=0 // pred_check_branch
    %65 = sbr.rel (0) target = $region17
  $region16: #{language_model_forward.22} parent=0 // pred_region
    _
  $region17: #{language_model_forward.22} parent=0 // pred_fallthru
    _
  // Predicated region
  $region18: #{language_model_forward.22} parent=0 // pred_check
    _
  $region19: #{language_model_forward.22} parent=0 // pred_check_branch
    %67 = sbr.rel (0) target = $region21
  $region20: #{language_model_forward.22} parent=0 // pred_region
    _
  $region21: #{language_model_forward.22} parent=0 // pred_fallthru
    _

// kernel: language_model_forward.16
$region0: #{language_model_forward.16}
  #allocation0 [shape = 'u32[]', space=smem, size = 0x4, offset = 0x4, fixed_abs, tag = 'smem constant byte address 0x4 - core index']
  #allocation1 [shape = 'u32[144,128]{1,0:T(1,128)}', space=vmem, size = 0x12000, scoped, tag = 'internal scratch']
  #allocation2 [shape = 'f32[16,32]{1,0:T(8,128)}', space=vmem, size = 0x2000, scoped, tag = 'scratch operand']
  %s0 = inlined_call_operand.vmem [shape: f32[16,64], index: 0, kind: input, shape index: {}]
  %s1 = inlined_call_operand.vmem [shape: bf16[64,32], index: 1, kind: input, shape index: {}]
  %s2 = inlined_call_operand.vmem [shape: f32[1,32], index: 2, kind: input, shape index: {}]
  %s3 = inlined_call_operand.vmem [shape: f32[16,32], index: 3, kind: input, shape index: {}]
  %s4 = inlined_call_operand.vmem [shape: f32[1,32], index: 4, kind: input, shape index: {}]
  %s5 = inlined_call_operand.vmem [shape: f32[1,32], index: 5, kind: input, shape index: {}]
  %s6 = inlined_call_operand.vmem [shape: f32[16,32], index: 6, kind: output, shape index: {}]
  %s7 = sld [smem:[#allocation0]]
  $region42: #{language_model_forward.16} parent=0
    _
  %s9 = ssub.s32 1, %s7
  %s10 = scalar_select 0, %s9, %s7
  // Predicated region
  $region2: #{language_model_forward.16} parent=0 // pred_check
    _
  $region3: #{language_model_forward.16} parent=0 // pred_check_branch
    %12 = sbr.rel (0) target = $region5
  $region4: #{language_model_forward.16} parent=0 // pred_region
    _
  $region5: #{language_model_forward.16} parent=0 // pred_fallthru
    _
  // Predicated region
  $region6: #{language_model_forward.16} parent=0 // pred_check
    _
  $region7: #{language_model_forward.16} parent=0 // pred_check_branch
    %14 = sbr.rel (0) target = $region9
  $region8: #{language_model_forward.16} parent=0 // pred_region
    _
  $region9: #{language_model_forward.16} parent=0 // pred_fallthru
    _
  // Predicated region
  $region10: #{language_model_forward.16} parent=0 // pred_check
    _
  $region11: #{language_model_forward.16} parent=0 // pred_check_branch
    %16 = sbr.rel (0) target = $region13
  $region12: #{language_model_forward.16} parent=0 // pred_region
    _
  $region13: #{language_model_forward.16} parent=0 // pred_fallthru
    _
  // Predicated region
  $region14: #{language_model_forward.16} parent=0 // pred_check
    _
  $region15: #{language_model_forward.16} parent=0 // pred_check_branch
    %18 = sbr.rel (0) target = $region17
  $region16: #{language_model_forward.16} parent=0 // pred_region
    _
  $region17: #{language_model_forward.16} parent=0 // pred_fallthru
    _
  // Predicated region
  $region18: #{language_model_forward.16} parent=0 // pred_check
    _
  $region19: #{language_model_forward.16} parent=0 // pred_check_branch
    %20 = sbr.rel (0) target = $region21
  $region20: #{language_model_forward.16} parent=0 // pred_region
    _
  $region21: #{language_model_forward.16} parent=0 // pred_fallthru
    _
  // Predicated region
  $region22: #{language_model_forward.16} parent=0 // pred_check
    _
  $region23: #{language_model_forward.16} parent=0 // pred_check_branch
    %22 = sbr.rel (0) target = $region25
  $region24: #{language_model_forward.16} parent=0 // pred_region
    _
  $region25: #{language_model_forward.16} parent=0 // pred_fallthru
    _
  %p24 = scmp.eq.s32.totalorder 0, 0
  // Predicated region
  $region26: #{language_model_forward.16} parent=0 // pred_check
    %p25 = pneg %p24
  $region27: #{language_model_forward.16} parent=0 // pred_check_branch
    %27 = sbr.rel (%p25) target = $region29
  $region28: #{language_model_forward.16} parent=0 // pred_region
    %vm28 = vcmask 261120
    %29 = vst.msk [vmem:[#allocation2] sm:$0xff] %vm28, 0.0
    %30 = vst.msk [vmem:[#allocation2 + $0x8] sm:$0xff] %vm28, 0.0
  $region29: #{language_model_forward.16} parent=0 // pred_fallthru
    _
  %v31 = vld [vmem:[#allocation2] sm:$0xff]
  %v32 = vld [vmem:[#allocation2 + $0x8] sm:$0xff]
  %v33 = vld [vmem:[%s0] sm:$0xff]
  %v34 = vld [vmem:[%s0 + $0x8] sm:$0xff]
  %v35 = vpack.c.bf16 %v34, %v33
  %v36 = vld [vmem:[%s1] sm:$0xf]
  %v37 = vld [vmem:[%s1 + $0x4] sm:$0xf]
  %v38 = vld [vmem:[%s1 + $0x8] sm:$0xf]
  %v39 = vld [vmem:[%s1 + $0xc] sm:$0xf]
  %v40 = vld [vmem:[%s1 + $0x10] sm:$0xf]
  %v41 = vld [vmem:[%s1 + $0x14] sm:$0xf]
  %v42 = vld [vmem:[%s1 + $0x18] sm:$0xf]
  %v43 = vld [vmem:[%s1 + $0x1c] sm:$0xf]
  %v52 = vunpack.c.l.b16 %v36
  %v53 = vunpack.c.l.b16 %v37
  %v54 = vunpack.c.l.b16 %v38
  %v55 = vunpack.c.l.b16 %v39
  %v56 = vunpack.c.l.b16 %v40
  %v57 = vunpack.c.l.b16 %v41
  %v58 = vunpack.c.l.b16 %v42
  %v59 = vunpack.c.l.b16 %v43
  %v60 = vpack.c.b16 %v53, %v52
  %v61 = vpack.c.b16 %v55, %v54
  %v62 = vpack.c.b16 %v57, %v56
  %v63 = vpack.c.b16 %v59, %v58
  %vm68 = vcmask 523264
  %v70 = vsel %vm68, %v35, 0
  %72 = vmatprep.subr.bf16.mxu0 0
  %73 = vmatpush1.bf16.msra.mxu0 %v60
  %74 = vmatprep.subr.bf16.mxu0 0
  %75 = vmatpush1.bf16.msra.mxu0 %v61
  %76 = vmatprep.subr.bf16.mxu0 0
  %77 = vmatpush1.bf16.msra.mxu0 %v62
  %78 = vmatprep.subr.bf16.mxu0 0
  %79 = vmatpush1.bf16.msra.mxu0 %v63
  %80 = vmatprep.subr.bf16.mxu0 0
  %81 = vmatpush1.bf16.msra.mxu0 0
  %82 = vmatprep.subr.bf16.mxu0 0
  %83 = vmatpush1.bf16.msra.mxu0 0
  %84 = vmatprep.subr.bf16.mxu0 0
  %85 = vmatpush1.bf16.msra.mxu0 0
  %86 = vmatprep.subr.bf16.mxu0 0
  %87 = vmatpush1.bf16.msra.mxu0 0
  %88 = vmatprep.subr.bf16.mxu0 0
  %89 = vmatpush1.bf16.msra.mxu0 0
  %90 = vmatprep.subr.bf16.mxu0 0
  %91 = vmatpush1.bf16.msra.mxu0 0
  %92 = vmatprep.subr.bf16.mxu0 0
  %93 = vmatpush1.bf16.msra.mxu0 0
  %94 = vmatprep.subr.bf16.mxu0 0
  %95 = vmatpush1.bf16.msra.mxu0 0
  %96 = vmatprep.subr.bf16.mxu0 0
  %97 = vmatpush1.bf16.msra.mxu0 0
  %98 = vmatprep.subr.bf16.mxu0 0
  %99 = vmatpush1.bf16.msra.mxu0 0
  %100 = vmatprep.subr.bf16.mxu0 0
  %101 = vmatpush1.bf16.msra.mxu0 0
  %102 = vmatprep.subr.bf16.mxu0 0
  %103 = vmatpush1.bf16.msra.mxu0 0
  %104 = vmatprep.mubr.bf16.mxu0 0
  %105 = vmatmul.mubr.bf16.gmra.mrb[0].mxu0 %v70
  %v106 = vpop.f32.mrb[0].mxu0
  %v107 = vadd.f32 0.0, %v106
  %v108 = vpop.f32.mrb[0].mxu0
  %v109 = vpop.f32.mrb[0].mxu0
  %v110 = vadd.f32 0.0, %v109
  %v111 = vpop.f32.mrb[0].mxu0
  %112 = vdwg.mxu0
  %v113 = vadd.f32 %v31, %v107
  %v114 = vadd.f32 %v32, %v110
  %vm115 = vcmask 261120
  %116 = vst.msk [vmem:[#allocation2] sm:$0xff] %vm115, %v113
  %117 = vst.msk [vmem:[#allocation2 + $0x8] sm:$0xff] %vm115, %v114
  // Predicated region
  $region30: #{language_model_forward.16} parent=0 // pred_check
    %p118 = pneg %p24
  $region31: #{language_model_forward.16} parent=0 // pred_check_branch
    %120 = sbr.rel (%p118) target = $region33
  $region32: #{language_model_forward.16} parent=0 // pred_region
    %v121 = vld [vmem:[#allocation2] sm:$0xff]
    %v122 = vld [vmem:[#allocation2 + $0x8] sm:$0xff]
    %v123 = vld [vmem:[%s2] sm:$0x1]
    %v125 = vlaneseq
    %v126 = vshrl.u32 %v125, 7
    %v127 = vsub.s32 0, %v126
    %v128 = vrot.slane %v123, %v127
    %v130 = vadd.f32 %v121, %v128
    %v131 = vadd.f32 %v122, %v128
    %v132 = vld [vmem:[%s3] sm:$0xff]
    %v133 = vld [vmem:[%s3 + $0x8] sm:$0xff]
    %v134 = vadd.f32 %v130, %v132
    %v135 = vadd.f32 %v131, %v133
    %v136 = vsel %vm115, %v134, 0.0
    %137 = vadd.xlane.f32.xlu0 %v136
    %v138 = vpop.xlane.xlu0 %137
    %v139 = vsel %vm115, %v135, 0.0
    %140 = vadd.xlane.f32.xlu0 %v139
    %v141 = vpop.xlane.xlu0 %140
    %v142 = vrcp.pop 32.0
    %v143 = vmul.f32 %v138, %v142
    %v144 = vmul.f32 %v141, %v142
    %v145 = vsub.f32 %v134, %v143
    %v146 = vsub.f32 %v135, %v144
    %v147 = vmul.f32 %v145, %v145
    %v148 = vmul.f32 %v146, %v146
    %v149 = vsel %vm115, %v147, 0.0
    %150 = vadd.xlane.f32.xlu0 %v149
    %v151 = vpop.xlane.xlu0 %150
    %v152 = vsel %vm115, %v148, 0.0
    %153 = vadd.xlane.f32.xlu0 %v152
    %v154 = vpop.xlane.xlu0 %153
    %v155 = vmul.f32 %v151, %v142
    %v156 = vmul.f32 %v154, %v142
    %v157 = vadd.f32 %v155, 1e-05
    %v158 = vadd.f32 %v156, 1e-05
    %v159 = vrsqrt.pop %v157
    %v160 = vrsqrt.pop %v158
    %v161 = vmul.f32 %v145, %v159
    %v162 = vmul.f32 %v146, %v160
    %v163 = vld [vmem:[%s4] sm:$0x1]
    %v165 = vlaneseq
    %v166 = vshrl.u32 %v165, 7
    %v167 = vsub.s32 0, %v166
    %v168 = vrot.slane %v163, %v167
    %v170 = vmul.f32 %v161, %v168
    %v171 = vmul.f32 %v162, %v168
    %v172 = vld [vmem:[%s5] sm:$0x1]
    %v174 = vlaneseq
    %v175 = vshrl.u32 %v174, 7
    %v176 = vsub.s32 0, %v175
    %v177 = vrot.slane %v172, %v176
    %v179 = vadd.f32 %v170, %v177
    %v180 = vadd.f32 %v171, %v177
    %181 = vst.msk [vmem:[%s6] sm:$0xff] %vm115, %v179
    %182 = vst.msk [vmem:[%s6 + $0x8] sm:$0xff] %vm115, %v180
  $region33: #{language_model_forward.16} parent=0 // pred_fallthru
    _
  // Predicated region
  $region34: #{language_model_forward.16} parent=0 // pred_check
    _
  $region35: #{language_model_forward.16} parent=0 // pred_check_branch
    %184 = sbr.rel (0) target = $region37
  $region36: #{language_model_forward.16} parent=0 // pred_region
    _
  $region37: #{language_model_forward.16} parent=0 // pred_fallthru
    _
  // Predicated region
  $region38: #{language_model_forward.16} parent=0 // pred_check
    _
  $region39: #{language_model_forward.16} parent=0 // pred_check_branch
    %186 = sbr.rel (0) target = $region41
  $region40: #{language_model_forward.16} parent=0 // pred_region
    _
  $region41: #{language_model_forward.16} parent=0 // pred_fallthru
    _

// kernel: language_model_forward.23
$region0: #{language_model_forward.23}
  #allocation0 [shape = 'u32[]', space=smem, size = 0x4, offset = 0x4, fixed_abs, tag = 'smem constant byte address 0x4 - core index']
  #allocation1 [shape = 'u32[144,128]{1,0:T(1,128)}', space=vmem, size = 0x12000, scoped, tag = 'internal scratch']
  #allocation2 [shape = 'f32[16,50]{1,0:T(8,128)}', space=vmem, size = 0x2000, scoped, tag = 'scratch operand']
  %s0 = inlined_call_operand.vmem [shape: f32[16,32], index: 0, kind: input, shape index: {}]
  %s1 = inlined_call_operand.vmem [shape: bf16[32,50], index: 1, kind: input, shape index: {}]
  %s2 = inlined_call_operand.vmem [shape: f32[1,50], index: 2, kind: input, shape index: {}]
  %s3 = inlined_call_operand.hbm [shape: f32[16,50], index: 3, kind: output, shape index: {}]
  %s4 = sld [smem:[#allocation0]]
  $region30: #{language_model_forward.23} parent=0
    _
  %s6 = ssub.s32 1, %s4
  %s7 = scalar_select 0, %s6, %s4
  $region1: #{language_model_forward.23} parent=0
    #allocation3 [shape = 'u8[8192]{0}', space=vmem, size = 0x2000, scoped, tag = 'output window, operand 0, single buffered']
    #allocation4 [shape = 's32[1]{0}', space=sflag, size = 0x4, scoped, tag = 'scoped memory for language_model_forward.23']
    %8 = vsyncpa [#allocation4], 0
    // Predicated region
    $region2: #{language_model_forward.23} parent=1 // pred_check
      _
    $region3: #{language_model_forward.23} parent=1 // pred_check_branch
      %10 = sbr.rel (0) target = $region5
    $region4: #{language_model_forward.23} parent=1 // pred_region
      _
    $region5: #{language_model_forward.23} parent=1 // pred_fallthru
      _
    // Predicated region
    $region6: #{language_model_forward.23} parent=1 // pred_check
      _
    $region7: #{language_model_forward.23} parent=1 // pred_check_branch
      %12 = sbr.rel (0) target = $region9
    $region8: #{language_model_forward.23} parent=1 // pred_region
      _
    $region9: #{language_model_forward.23} parent=1 // pred_fallthru
      _
    // Predicated region
    $region10: #{language_model_forward.23} parent=1 // pred_check
      _
    $region11: #{language_model_forward.23} parent=1 // pred_check_branch
      %14 = sbr.rel (0) target = $region13
    $region12: #{language_model_forward.23} parent=1 // pred_region
      _
    $region13: #{language_model_forward.23} parent=1 // pred_fallthru
      _
    %p16 = scmp.eq.s32.totalorder 0, 0
    // Predicated region
    $region14: #{language_model_forward.23} parent=1 // pred_check
      %p17 = pneg %p16
    $region15: #{language_model_forward.23} parent=1 // pred_check_branch
      %19 = sbr.rel (%p17) target = $region17
    $region16: #{language_model_forward.23} parent=1 // pred_region
      %vm20 = vcmask 408576
      %21 = vst.msk [vmem:[#allocation2] sm:$0xff] %vm20, 0.0
      %22 = vst.msk [vmem:[#allocation2 + $0x8] sm:$0xff] %vm20, 0.0
    $region17: #{language_model_forward.23} parent=1 // pred_fallthru
      _
    %v23 = vld [vmem:[#allocation2] sm:$0xff]
    %v24 = vld [vmem:[#allocation2 + $0x8] sm:$0xff]
    %v25 = vld [vmem:[%s0] sm:$0xff]
    %v26 = vld [vmem:[%s0 + $0x8] sm:$0xff]
    %v27 = vpack.c.bf16 %v26, %v25
    %v28 = vld [vmem:[%s1] sm:$0xf]
    %v29 = vld [vmem:[%s1 + $0x4] sm:$0xf]
    %v30 = vld [vmem:[%s1 + $0x8] sm:$0xf]
    %v31 = vld [vmem:[%s1 + $0xc] sm:$0xf]
    %v36 = vunpack.c.l.b16 %v28
    %v37 = vunpack.c.l.b16 %v29
    %v38 = vunpack.c.l.b16 %v30
    %v39 = vunpack.c.l.b16 %v31
    %v40 = vpack.c.b16 %v37, %v36
    %v41 = vpack.c.b16 %v39, %v38
    %vm44 = vcmask 261120
    %v46 = vsel %vm44, %v27, 0
    %48 = vmatprep.subr.bf16.mxu0 0
    %49 = vmatpush1.bf16.msra.mxu0 %v40
    %50 = vmatprep.subr.bf16.mxu0 0
    %51 = vmatpush1.bf16.msra.mxu0 %v41
    %52 = vmatprep.subr.bf16.mxu0 0
    %53 = vmatpush1.bf16.msra.mxu0 0
    %54 = vmatprep.subr.bf16.mxu0 0
    %55 = vmatpush1.bf16.msra.mxu0 0
    %56 = vmatprep.subr.bf16.mxu0 0
    %57 = vmatpush1.bf16.msra.mxu0 0
    %58 = vmatprep.subr.bf16.mxu0 0
    %59 = vmatpush1.bf16.msra.mxu0 0
    %60 = vmatprep.subr.bf16.mxu0 0
    %61 = vmatpush1.bf16.msra.mxu0 0
    %62 = vmatprep.subr.bf16.mxu0 0
    %63 = vmatpush1.bf16.msra.mxu0 0
    %64 = vmatprep.subr.bf16.mxu0 0
    %65 = vmatpush1.bf16.msra.mxu0 0
    %66 = vmatprep.subr.bf16.mxu0 0
    %67 = vmatpush1.bf16.msra.mxu0 0
    %68 = vmatprep.subr.bf16.mxu0 0
    %69 = vmatpush1.bf16.msra.mxu0 0
    %70 = vmatprep.subr.bf16.mxu0 0
    %71 = vmatpush1.bf16.msra.mxu0 0
    %72 = vmatprep.subr.bf16.mxu0 0
    %73 = vmatpush1.bf16.msra.mxu0 0
    %74 = vmatprep.subr.bf16.mxu0 0
    %75 = vmatpush1.bf16.msra.mxu0 0
    %76 = vmatprep.subr.bf16.mxu0 0
    %77 = vmatpush1.bf16.msra.mxu0 0
    %78 = vmatprep.subr.bf16.mxu0 0
    %79 = vmatpush1.bf16.msra.mxu0 0
    %80 = vmatprep.mubr.bf16.mxu0 0
    %81 = vmatmul.mubr.bf16.gmra.mrb[0].mxu0 %v46
    %v82 = vpop.f32.mrb[0].mxu0
    %v83 = vadd.f32 0.0, %v82
    %v84 = vpop.f32.mrb[0].mxu0
    %v85 = vpop.f32.mrb[0].mxu0
    %v86 = vadd.f32 0.0, %v85
    %v87 = vpop.f32.mrb[0].mxu0
    %88 = vdwg.mxu0
    %v89 = vadd.f32 %v23, %v83
    %v90 = vadd.f32 %v24, %v86
    %vm91 = vcmask 408576
    %92 = vst.msk [vmem:[#allocation2] sm:$0xff] %vm91, %v89
    %93 = vst.msk [vmem:[#allocation2 + $0x8] sm:$0xff] %vm91, %v90
    // Predicated region
    $region18: #{language_model_forward.23} parent=1 // pred_check
      %p94 = pneg %p16
    $region19: #{language_model_forward.23} parent=1 // pred_check_branch
      %96 = sbr.rel (%p94) target = $region21
    $region20: #{language_model_forward.23} parent=1 // pred_region
      %v97 = vld [vmem:[#allocation2] sm:$0xff]
      %v98 = vld [vmem:[#allocation2 + $0x8] sm:$0xff]
      %v99 = vld [vmem:[%s2] sm:$0x1]
      %v101 = vlaneseq
      %v102 = vshrl.u32 %v101, 7
      %v103 = vsub.s32 0, %v102
      %v104 = vrot.slane %v99, %v103
      %v106 = vadd.f32 %v97, %v104
      %v107 = vadd.f32 %v98, %v104
      %108 = vst.msk [vmem:[#allocation3] sm:$0xff] %vm91, %v106
      %109 = vst.msk [vmem:[#allocation3 + $0x8] sm:$0xff] %vm91, %v107
    $region21: #{language_model_forward.23} parent=1 // pred_fallthru
      _
    // Predicated region
    $region22: #{language_model_forward.23} parent=1 // pred_check
      _
    $region23: #{language_model_forward.23} parent=1 // pred_check_branch
      %111 = sbr.rel (0) target = $region25
    $region24: #{language_model_forward.23} parent=1 // pred_region
      %s113 = ssub.s32 256, 256
      %114 = vsyncadd [#allocation4], %s113
      %s115 = sshll.u32 [#allocation3], 4
      %s116 = int_to_ptr.vmem [resolvable:$true] %s115
      %121 = dma.vmem_to_hbm [thread:$0]  %s116, 256, %s3, [#allocation4], 128, 128, 8
    $region25: #{language_model_forward.23} parent=1 // pred_fallthru
      _
    // Predicated region
    $region26: #{language_model_forward.23} parent=1 // pred_check
      _
    $region27: #{language_model_forward.23} parent=1 // pred_check_branch
      %123 = sbr.rel (0) target = $region29
    $region28: #{language_model_forward.23} parent=1 // pred_region
      %124 = dma.done [#allocation4], 256
    $region29: #{language_model_forward.23} parent=1 // pred_fallthru
      _
    %125 = vsyncpa [#allocation4], 1

</llo_original>
